<compile_context>
chip_gen: v6e
topology: v6e:2x2x1
jax: 0.10.0
libtpu: 0.0.40
codegen_flags: <defaults>
</compile_context>

<pallas_src>
import jax
import jax.numpy as jnp
from jax.experimental import pallas as pl
from jax.experimental.pallas import tpu as pltpu  # noqa: F401

LN_EPS = 1e-5


def _layernorm(v, gamma, beta):
    mu = jnp.mean(v, axis=-1, keepdims=True)
    var = jnp.mean((v - mu) ** 2, axis=-1, keepdims=True)
    return (v - mu) * jax.lax.rsqrt(var + LN_EPS) * gamma + beta


# ----------------------------- Fused kernel ---------------------------------
def fused_kernel(x_ref,        # [B, S, D]
                 wih_ref,      # [D, 4H]
                 whh_ref,      # [H, 4H]
                 blstm_ref,    # [1, 4H]   (bias_ih + bias_hh)
                 w1s_ref,      # [H, 2H]   (gate_net layer-1 weight, short rows)
                 w2_ref,       # [2H, 2H]
                 wc_ref,       # [2H, H]
                 vec2h_ref,    # [6, 2H]:  b1_eff, g1, be1, b2, g2, be2
                 vech_ref,     # [4, H]:   bc, gc, bec, long_total
                 out_ref,      # [B, H]    final_mem
                 h_out_ref,    # [B, H]
                 c_out_ref):   # [B, H]
    B, S, D = x_ref.shape
    H = h_out_ref.shape[-1]

    # ---- Pre-pass: hoist the input projection out of the serial recurrence.
    # One batched [B*S, D] x [D, 4H] matmul; both reshapes are tile-aligned.
    x2d = x_ref[...].reshape(B * S, D)
    xproj = (jnp.dot(x2d, wih_ref[...], preferred_element_type=jnp.float32)
             + blstm_ref[...]).reshape(B, S, 4 * H)

    whh = whh_ref[...]
    # Lane mask (hoisted out of the loop): lanes [2H, 3H) are the g-gate (tanh),
    # all other lanes are sigmoid (PyTorch gate order i, f, g, o).
    lane = jax.lax.broadcasted_iota(jnp.int32, (B, 4 * H), 1)
    is_g = (lane >= 2 * H) & (lane < 3 * H)

    h = jnp.zeros((B, H), jnp.float32)
    c = jnp.zeros((B, H), jnp.float32)
    # Fully-unrolled recurrence; only h @ W_hh remains on the serial path and
    # h/c stay in vregs as loop carries.
    for s in range(S):
        gates = xproj[:, s, :] + jnp.dot(
            h, whh, preferred_element_type=jnp.float32)          # [B, 4H]
        acts = jnp.where(is_g, jnp.tanh(gates), jax.nn.sigmoid(gates))
        i_g = acts[:, 0 * H:1 * H]
        f_g = acts[:, 1 * H:2 * H]
        g_g = acts[:, 2 * H:3 * H]
        o_g = acts[:, 3 * H:4 * H]
        c = f_g * c + i_g * g_g
        h = o_g * jnp.tanh(c)

    h_out_ref[...] = h
    c_out_ref[...] = c

    # ---- Fused head: gate_net -> gating -> compress.
    # TODO(synk): nn.Dropout(p=0.1) omitted (identity in eval mode).
    v2 = vec2h_ref[...]                                          # [6, 2H]
    v1 = vech_ref[...]                                           # [4, H]
    b1e, g1, be1 = v2[0:1], v2[1:2], v2[2:3]
    b2, g2, be2 = v2[3:4], v2[4:5], v2[5:6]
    bc, gc, bec = v1[0:1], v1[1:2], v1[2:3]
    long_row = v1[3:4]                                           # [1, H]

    # combined = [short_mem | long_mem_batch] -- only needed for the gating
    # multiply; its contribution to the first linear layer is folded into b1e.
    comb = jnp.concatenate(
        [h, jnp.broadcast_to(long_row, (B, H))], axis=-1)        # [B, 2H]

    h1 = jnp.dot(h, w1s_ref[...], preferred_element_type=jnp.float32) + b1e
    h1 = jnp.maximum(_layernorm(h1, g1, be1), 0.0)
    h2 = jnp.dot(h1, w2_ref[...], preferred_element_type=jnp.float32) + b2
    gates = jax.nn.sigmoid(_layernorm(h2, g2, be2))              # [B, 2H]

    gated = comb * gates                      # single full-width VPU multiply
    hc = jnp.dot(gated, wc_ref[...], preferred_element_type=jnp.float32) + bc
    out_ref[...] = jnp.maximum(_layernorm(hc, gc, bec), 0.0)


# ------------------------------ Full module ---------------------------------
def dual_memory_forward(x, params):
    """x: [B, S, d_model] -> (final_mem [B, H], (h [1, B, H], c [1, B, H]))"""
    B, S, D = x.shape
    H = params["w_hh"].shape[0]

    long_total = params["long_mem"] + params["long_mem_prior"]           # [H]
    # Fold the batch-invariant long-memory row into the first layer's bias.
    b1_eff = params["b1"] + long_total[None, :] @ params["w1"][H:, :]    # [1,2H]
    w1_short = params["w1"][:H, :]                                       # [H,2H]
    vec2h = jnp.concatenate(
        [b1_eff, params["g1"], params["be1"],
         params["b2"], params["g2"], params["be2"]], axis=0)             # [6,2H]
    vech = jnp.concatenate(
        [params["bc"], params["gc"], params["bec"], long_total[None, :]],
        axis=0)                                                          # [4,H]

    final_mem, h_last, c_last = pl.pallas_call(
        fused_kernel,
        out_shape=(
            jax.ShapeDtypeStruct((B, H), jnp.float32),
            jax.ShapeDtypeStruct((B, H), jnp.float32),
            jax.ShapeDtypeStruct((B, H), jnp.float32),
        ),
    )(x, params["w_ih"], params["w_hh"], params["b_lstm"],
      w1_short, params["w2"], params["wc"], vec2h, vech)

    return final_mem, (h_last[None], c_last[None])


dual_memory_forward_jit = jax.jit(dual_memory_forward)


# --------------------------- Pure-JAX reference -----------------------------
def reference_forward(x, params):
    B, S, D = x.shape
    H = params["w_hh"].shape[0]

    def step(carry, xt):
        h, c = carry
        gates = xt @ params["w_ih"] + h @ params["w_hh"] + params["b_lstm"][0]
        i = jax.nn.sigmoid(gates[:, 0 * H:1 * H])
        f = jax.nn.sigmoid(gates[:, 1 * H:2 * H])
        g = jnp.tanh(gates[:, 2 * H:3 * H])
        o = jax.nn.sigmoid(gates[:, 3 * H:4 * H])
        c = f * c + i * g
        h = o * jnp.tanh(c)
        return (h, c), h

    (h, c), _ = jax.lax.scan(step, (jnp.zeros((B, H)), jnp.zeros((B, H))),
                             jnp.swapaxes(x, 0, 1))
    short_mem = h
    long_total = params["long_mem"] + params["long_mem_prior"]
    long_batch = jnp.broadcast_to(long_total[None, :], (B, H))
    comb = jnp.concatenate([short_mem, long_batch], axis=-1)

    def ln(v, g_, b_):
        mu = v.mean(-1, keepdims=True)
        var = ((v - mu) ** 2).mean(-1, keepdims=True)
        return (v - mu) / jnp.sqrt(var + LN_EPS) * g_ + b_

    h1 = jnp.maximum(ln(comb @ params["w1"] + params["b1"],
                        params["g1"], params["be1"]), 0.0)
    gates = jax.nn.sigmoid(ln(h1 @ params["w2"] + params["b2"],
                              params["g2"], params["be2"]))
    gated = jnp.concatenate(
        [short_mem * gates[:, :H], long_batch * gates[:, H:]], axis=-1)
    out = jnp.maximum(ln(gated @ params["wc"] + params["bc"],
                         params["gc"], params["bec"]), 0.0)
    return out, (h[None], c[None])


# --------------------------------- Params ------------------------------------
def make_params(key, d_model, memory_dim):
    H = memory_dim
    ks = jax.random.split(key, 10)
    scale = 1.0 / jnp.sqrt(H)
    p = {
        # LSTM (pre-transposed: [in, 4H] and [H, 4H]); bias = bias_ih + bias_hh.
        "w_ih": jax.random.uniform(ks[0], (d_model, 4 * H), jnp.float32, -scale, scale),
        "w_hh": jax.random.uniform(ks[1], (H, 4 * H), jnp.float32, -scale, scale),
        "b_lstm": jax.random.uniform(ks[2], (1, 4 * H), jnp.float32, -scale, scale),
        # long memory params (std=0.02 normal as in _init_params)
        "long_mem": 0.02 * jax.random.normal(ks[3], (H,), jnp.float32),
        "long_mem_prior": 0.02 * jax.random.normal(ks[4], (H,), jnp.float32),
        # gate_net linear layers ([in, out] layout).
        # TODO(synk): orthogonal init replaced by scaled normal; forward
        # semantics are unchanged.
        "w1": 0.05 * jax.random.normal(ks[5], (2 * H, 2 * H), jnp.float32),
        "b1": jnp.zeros((1, 2 * H), jnp.float32),
        "g1": jnp.ones((1, 2 * H), jnp.float32),
        "be1": jnp.zeros((1, 2 * H), jnp.float32),
        "w2": 0.05 * jax.random.normal(ks[6], (2 * H, 2 * H), jnp.float32),
        "b2": jnp.zeros((1, 2 * H), jnp.float32),
        "g2": jnp.ones((1, 2 * H), jnp.float32),
        "be2": jnp.zeros((1, 2 * H), jnp.float32),
        # compress
        "wc": 0.05 * jax.random.normal(ks[7], (2 * H, H), jnp.float32),
        "bc": jnp.zeros((1, H), jnp.float32),
        "gc": jnp.ones((1, H), jnp.float32),
        "bec": jnp.zeros((1, H), jnp.float32),
    }
    return p


# --------------------------------- Main --------------------------------------
if __name__ == "__main__":
    B, S, d_model, memory_dim = 2, 8, 32, 32
    key = jax.random.PRNGKey(0)
    kx, kp = jax.random.split(key)
    x = jax.random.normal(kx, (B, S, d_model), jnp.float32)
    params = make_params(kp, d_model, memory_dim)

    final_mem, (h, c) = dual_memory_forward_jit(x, params)
    jax.block_until_ready(final_mem)
    jax.block_until_ready(h)
    jax.block_until_ready(c)

    ref_mem, (ref_h, ref_c) = reference_forward(x, params)
    assert final_mem.shape == (B, memory_dim)
    assert h.shape == (1, B, memory_dim) and c.shape == (1, B, memory_dim)
    assert jnp.allclose(final_mem, ref_mem, atol=1e-4, rtol=1e-4)
    assert jnp.allclose(h, ref_h, atol=1e-4, rtol=1e-4)
    assert jnp.allclose(c, ref_c, atol=1e-4, rtol=1e-4)

    print("KERNEL_OK")
</pallas_src>

<mosaic_0001>
module attributes {stable_mosaic.version = 11 : i64} {
  func.func @fused_kernel(%arg0: memref<2x8x32xf32, #tpu.memory_space<vmem>>, %arg1: memref<32x128xf32, #tpu.memory_space<vmem>>, %arg2: memref<32x128xf32, #tpu.memory_space<vmem>>, %arg3: memref<1x128xf32, #tpu.memory_space<vmem>>, %arg4: memref<32x64xf32, #tpu.memory_space<vmem>>, %arg5: memref<64x64xf32, #tpu.memory_space<vmem>>, %arg6: memref<64x32xf32, #tpu.memory_space<vmem>>, %arg7: memref<6x64xf32, #tpu.memory_space<vmem>>, %arg8: memref<4x32xf32, #tpu.memory_space<vmem>>, %arg9: memref<2x32xf32, #tpu.memory_space<vmem>>, %arg10: memref<2x32xf32, #tpu.memory_space<vmem>>, %arg11: memref<2x32xf32, #tpu.memory_space<vmem>>) attributes {dimension_semantics = [], scalar_prefetch = 0 : i64, scratch_operands = 0 : i64, tpu.core_type = #tpu.core_type<tc>} {
    %c0 = arith.constant 0 : index
    %c0_0 = arith.constant 0 : index
    %c0_1 = arith.constant 0 : index
    %0 = vector.load %arg0[%c0, %c0_0, %c0_1] : memref<2x8x32xf32, #tpu.memory_space<vmem>>, vector<2x8x32xf32>
    %1 = vector.shape_cast %0 : vector<2x8x32xf32> to vector<16x32xf32>
    %c0_2 = arith.constant 0 : index
    %c0_3 = arith.constant 0 : index
    %2 = vector.load %arg1[%c0_2, %c0_3] : memref<32x128xf32, #tpu.memory_space<vmem>>, vector<32x128xf32>
    %cst = arith.constant dense<0.000000e+00> : vector<16x128xf32>
    %3 = tpu.matmul %1, %2, %cst {dimension_numbers = #tpu.dot_dimension_numbers<[1], [0], [0], [1], [0, 0, 1, 1], [], []>} : vector<16x32xf32>, vector<32x128xf32>, vector<16x128xf32> -> vector<16x128xf32>
    %c0_4 = arith.constant 0 : index
    %c0_5 = arith.constant 0 : index
    %4 = vector.load %arg3[%c0_4, %c0_5] : memref<1x128xf32, #tpu.memory_space<vmem>>, vector<1x128xf32>
    %5 = vector.broadcast %4 : vector<1x128xf32> to vector<16x128xf32>
    %6 = arith.addf %3, %5 : vector<16x128xf32>
    %7 = vector.shape_cast %6 : vector<16x128xf32> to vector<2x8x128xf32>
    %c0_6 = arith.constant 0 : index
    %c0_7 = arith.constant 0 : index
    %8 = vector.load %arg2[%c0_6, %c0_7] : memref<32x128xf32, #tpu.memory_space<vmem>>, vector<32x128xf32>
    %9 = tpu.iota {dimensions = array<i32: 1>} : vector<2x128xi32>
    %c64_i32 = arith.constant 64 : i32
    %10 = vector.broadcast %c64_i32 : i32 to vector<2x128xi32>
    %11 = arith.cmpi sge, %9, %10 : vector<2x128xi32>
    %c96_i32 = arith.constant 96 : i32
    %12 = vector.broadcast %c96_i32 : i32 to vector<2x128xi32>
    %13 = arith.cmpi slt, %9, %12 : vector<2x128xi32>
    %14 = arith.andi %11, %13 : vector<2x128xi1>
    %cst_8 = arith.constant 0.000000e+00 : f32
    %15 = vector.broadcast %cst_8 : f32 to vector<2x32xf32>
    %cst_9 = arith.constant 0.000000e+00 : f32
    %16 = vector.broadcast %cst_9 : f32 to vector<2x32xf32>
    %17 = vector.extract_strided_slice %7 {offsets = [0, 0, 0], sizes = [2, 1, 128], strides = [1, 1, 1]} : vector<2x8x128xf32> to vector<2x1x128xf32>
    %18 = vector.shape_cast %17 : vector<2x1x128xf32> to vector<2x128xf32>
    %cst_10 = arith.constant dense<0.000000e+00> : vector<2x128xf32>
    %19 = tpu.matmul %15, %8, %cst_10 {dimension_numbers = #tpu.dot_dimension_numbers<[1], [0], [0], [1], [0, 0, 1, 1], [], []>} : vector<2x32xf32>, vector<32x128xf32>, vector<2x128xf32> -> vector<2x128xf32>
    %20 = arith.addf %18, %19 : vector<2x128xf32>
    %21 = math.tanh %20 : vector<2x128xf32>
    %22 = arith.negf %20 : vector<2x128xf32>
    %23 = math.exp %22 : vector<2x128xf32>
    %cst_11 = arith.constant 1.000000e+00 : f32
    %24 = vector.broadcast %cst_11 : f32 to vector<2x128xf32>
    %25 = arith.addf %24, %23 : vector<2x128xf32>
    %26 = arith.divf %24, %25 : vector<2x128xf32>
    %27 = arith.select %14, %21, %26 : vector<2x128xi1>, vector<2x128xf32>
    %28 = vector.extract_strided_slice %27 {offsets = [0, 0], sizes = [2, 32], strides = [1, 1]} : vector<2x128xf32> to vector<2x32xf32>
    %29 = vector.extract_strided_slice %27 {offsets = [0, 32], sizes = [2, 32], strides = [1, 1]} : vector<2x128xf32> to vector<2x32xf32>
    %30 = vector.extract_strided_slice %27 {offsets = [0, 64], sizes = [2, 32], strides = [1, 1]} : vector<2x128xf32> to vector<2x32xf32>
    %31 = vector.extract_strided_slice %27 {offsets = [0, 96], sizes = [2, 32], strides = [1, 1]} : vector<2x128xf32> to vector<2x32xf32>
    %32 = arith.mulf %29, %16 : vector<2x32xf32>
    %33 = arith.mulf %28, %30 : vector<2x32xf32>
    %34 = arith.addf %32, %33 : vector<2x32xf32>
    %35 = math.tanh %34 : vector<2x32xf32>
    %36 = arith.mulf %31, %35 : vector<2x32xf32>
    %37 = vector.extract_strided_slice %7 {offsets = [0, 1, 0], sizes = [2, 1, 128], strides = [1, 1, 1]} : vector<2x8x128xf32> to vector<2x1x128xf32>
    %38 = vector.shape_cast %37 : vector<2x1x128xf32> to vector<2x128xf32>
    %cst_12 = arith.constant dense<0.000000e+00> : vector<2x128xf32>
    %39 = tpu.matmul %36, %8, %cst_12 {dimension_numbers = #tpu.dot_dimension_numbers<[1], [0], [0], [1], [0, 0, 1, 1], [], []>} : vector<2x32xf32>, vector<32x128xf32>, vector<2x128xf32> -> vector<2x128xf32>
    %40 = arith.addf %38, %39 : vector<2x128xf32>
    %41 = math.tanh %40 : vector<2x128xf32>
    %42 = arith.negf %40 : vector<2x128xf32>
    %43 = math.exp %42 : vector<2x128xf32>
    %cst_13 = arith.constant 1.000000e+00 : f32
    %44 = vector.broadcast %cst_13 : f32 to vector<2x128xf32>
    %45 = arith.addf %44, %43 : vector<2x128xf32>
    %46 = arith.divf %44, %45 : vector<2x128xf32>
    %47 = arith.select %14, %41, %46 : vector<2x128xi1>, vector<2x128xf32>
    %48 = vector.extract_strided_slice %47 {offsets = [0, 0], sizes = [2, 32], strides = [1, 1]} : vector<2x128xf32> to vector<2x32xf32>
    %49 = vector.extract_strided_slice %47 {offsets = [0, 32], sizes = [2, 32], strides = [1, 1]} : vector<2x128xf32> to vector<2x32xf32>
    %50 = vector.extract_strided_slice %47 {offsets = [0, 64], sizes = [2, 32], strides = [1, 1]} : vector<2x128xf32> to vector<2x32xf32>
    %51 = vector.extract_strided_slice %47 {offsets = [0, 96], sizes = [2, 32], strides = [1, 1]} : vector<2x128xf32> to vector<2x32xf32>
    %52 = arith.mulf %49, %34 : vector<2x32xf32>
    %53 = arith.mulf %48, %50 : vector<2x32xf32>
    %54 = arith.addf %52, %53 : vector<2x32xf32>
    %55 = math.tanh %54 : vector<2x32xf32>
    %56 = arith.mulf %51, %55 : vector<2x32xf32>
    %57 = vector.extract_strided_slice %7 {offsets = [0, 2, 0], sizes = [2, 1, 128], strides = [1, 1, 1]} : vector<2x8x128xf32> to vector<2x1x128xf32>
    %58 = vector.shape_cast %57 : vector<2x1x128xf32> to vector<2x128xf32>
    %cst_14 = arith.constant dense<0.000000e+00> : vector<2x128xf32>
    %59 = tpu.matmul %56, %8, %cst_14 {dimension_numbers = #tpu.dot_dimension_numbers<[1], [0], [0], [1], [0, 0, 1, 1], [], []>} : vector<2x32xf32>, vector<32x128xf32>, vector<2x128xf32> -> vector<2x128xf32>
    %60 = arith.addf %58, %59 : vector<2x128xf32>
    %61 = math.tanh %60 : vector<2x128xf32>
    %62 = arith.negf %60 : vector<2x128xf32>
    %63 = math.exp %62 : vector<2x128xf32>
    %cst_15 = arith.constant 1.000000e+00 : f32
    %64 = vector.broadcast %cst_15 : f32 to vector<2x128xf32>
    %65 = arith.addf %64, %63 : vector<2x128xf32>
    %66 = arith.divf %64, %65 : vector<2x128xf32>
    %67 = arith.select %14, %61, %66 : vector<2x128xi1>, vector<2x128xf32>
    %68 = vector.extract_strided_slice %67 {offsets = [0, 0], sizes = [2, 32], strides = [1, 1]} : vector<2x128xf32> to vector<2x32xf32>
    %69 = vector.extract_strided_slice %67 {offsets = [0, 32], sizes = [2, 32], strides = [1, 1]} : vector<2x128xf32> to vector<2x32xf32>
    %70 = vector.extract_strided_slice %67 {offsets = [0, 64], sizes = [2, 32], strides = [1, 1]} : vector<2x128xf32> to vector<2x32xf32>
    %71 = vector.extract_strided_slice %67 {offsets = [0, 96], sizes = [2, 32], strides = [1, 1]} : vector<2x128xf32> to vector<2x32xf32>
    %72 = arith.mulf %69, %54 : vector<2x32xf32>
    %73 = arith.mulf %68, %70 : vector<2x32xf32>
    %74 = arith.addf %72, %73 : vector<2x32xf32>
    %75 = math.tanh %74 : vector<2x32xf32>
    %76 = arith.mulf %71, %75 : vector<2x32xf32>
    %77 = vector.extract_strided_slice %7 {offsets = [0, 3, 0], sizes = [2, 1, 128], strides = [1, 1, 1]} : vector<2x8x128xf32> to vector<2x1x128xf32>
    %78 = vector.shape_cast %77 : vector<2x1x128xf32> to vector<2x128xf32>
    %cst_16 = arith.constant dense<0.000000e+00> : vector<2x128xf32>
    %79 = tpu.matmul %76, %8, %cst_16 {dimension_numbers = #tpu.dot_dimension_numbers<[1], [0], [0], [1], [0, 0, 1, 1], [], []>} : vector<2x32xf32>, vector<32x128xf32>, vector<2x128xf32> -> vector<2x128xf32>
    %80 = arith.addf %78, %79 : vector<2x128xf32>
    %81 = math.tanh %80 : vector<2x128xf32>
    %82 = arith.negf %80 : vector<2x128xf32>
    %83 = math.exp %82 : vector<2x128xf32>
    %cst_17 = arith.constant 1.000000e+00 : f32
    %84 = vector.broadcast %cst_17 : f32 to vector<2x128xf32>
    %85 = arith.addf %84, %83 : vector<2x128xf32>
    %86 = arith.divf %84, %85 : vector<2x128xf32>
    %87 = arith.select %14, %81, %86 : vector<2x128xi1>, vector<2x128xf32>
    %88 = vector.extract_strided_slice %87 {offsets = [0, 0], sizes = [2, 32], strides = [1, 1]} : vector<2x128xf32> to vector<2x32xf32>
    %89 = vector.extract_strided_slice %87 {offsets = [0, 32], sizes = [2, 32], strides = [1, 1]} : vector<2x128xf32> to vector<2x32xf32>
    %90 = vector.extract_strided_slice %87 {offsets = [0, 64], sizes = [2, 32], strides = [1, 1]} : vector<2x128xf32> to vector<2x32xf32>
    %91 = vector.extract_strided_slice %87 {offsets = [0, 96], sizes = [2, 32], strides = [1, 1]} : vector<2x128xf32> to vector<2x32xf32>
    %92 = arith.mulf %89, %74 : vector<2x32xf32>
    %93 = arith.mulf %88, %90 : vector<2x32xf32>
    %94 = arith.addf %92, %93 : vector<2x32xf32>
    %95 = math.tanh %94 : vector<2x32xf32>
    %96 = arith.mulf %91, %95 : vector<2x32xf32>
    %97 = vector.extract_strided_slice %7 {offsets = [0, 4, 0], sizes = [2, 1, 128], strides = [1, 1, 1]} : vector<2x8x128xf32> to vector<2x1x128xf32>
    %98 = vector.shape_cast %97 : vector<2x1x128xf32> to vector<2x128xf32>
    %cst_18 = arith.constant dense<0.000000e+00> : vector<2x128xf32>
    %99 = tpu.matmul %96, %8, %cst_18 {dimension_numbers = #tpu.dot_dimension_numbers<[1], [0], [0], [1], [0, 0, 1, 1], [], []>} : vector<2x32xf32>, vector<32x128xf32>, vector<2x128xf32> -> vector<2x128xf32>
    %100 = arith.addf %98, %99 : vector<2x128xf32>
    %101 = math.tanh %100 : vector<2x128xf32>
    %102 = arith.negf %100 : vector<2x128xf32>
    %103 = math.exp %102 : vector<2x128xf32>
    %cst_19 = arith.constant 1.000000e+00 : f32
    %104 = vector.broadcast %cst_19 : f32 to vector<2x128xf32>
    %105 = arith.addf %104, %103 : vector<2x128xf32>
    %106 = arith.divf %104, %105 : vector<2x128xf32>
    %107 = arith.select %14, %101, %106 : vector<2x128xi1>, vector<2x128xf32>
    %108 = vector.extract_strided_slice %107 {offsets = [0, 0], sizes = [2, 32], strides = [1, 1]} : vector<2x128xf32> to vector<2x32xf32>
    %109 = vector.extract_strided_slice %107 {offsets = [0, 32], sizes = [2, 32], strides = [1, 1]} : vector<2x128xf32> to vector<2x32xf32>
    %110 = vector.extract_strided_slice %107 {offsets = [0, 64], sizes = [2, 32], strides = [1, 1]} : vector<2x128xf32> to vector<2x32xf32>
    %111 = vector.extract_strided_slice %107 {offsets = [0, 96], sizes = [2, 32], strides = [1, 1]} : vector<2x128xf32> to vector<2x32xf32>
    %112 = arith.mulf %109, %94 : vector<2x32xf32>
    %113 = arith.mulf %108, %110 : vector<2x32xf32>
    %114 = arith.addf %112, %113 : vector<2x32xf32>
    %115 = math.tanh %114 : vector<2x32xf32>
    %116 = arith.mulf %111, %115 : vector<2x32xf32>
    %117 = vector.extract_strided_slice %7 {offsets = [0, 5, 0], sizes = [2, 1, 128], strides = [1, 1, 1]} : vector<2x8x128xf32> to vector<2x1x128xf32>
    %118 = vector.shape_cast %117 : vector<2x1x128xf32> to vector<2x128xf32>
    %cst_20 = arith.constant dense<0.000000e+00> : vector<2x128xf32>
    %119 = tpu.matmul %116, %8, %cst_20 {dimension_numbers = #tpu.dot_dimension_numbers<[1], [0], [0], [1], [0, 0, 1, 1], [], []>} : vector<2x32xf32>, vector<32x128xf32>, vector<2x128xf32> -> vector<2x128xf32>
    %120 = arith.addf %118, %119 : vector<2x128xf32>
    %121 = math.tanh %120 : vector<2x128xf32>
    %122 = arith.negf %120 : vector<2x128xf32>
    %123 = math.exp %122 : vector<2x128xf32>
    %cst_21 = arith.constant 1.000000e+00 : f32
    %124 = vector.broadcast %cst_21 : f32 to vector<2x128xf32>
    %125 = arith.addf %124, %123 : vector<2x128xf32>
    %126 = arith.divf %124, %125 : vector<2x128xf32>
    %127 = arith.select %14, %121, %126 : vector<2x128xi1>, vector<2x128xf32>
    %128 = vector.extract_strided_slice %127 {offsets = [0, 0], sizes = [2, 32], strides = [1, 1]} : vector<2x128xf32> to vector<2x32xf32>
    %129 = vector.extract_strided_slice %127 {offsets = [0, 32], sizes = [2, 32], strides = [1, 1]} : vector<2x128xf32> to vector<2x32xf32>
    %130 = vector.extract_strided_slice %127 {offsets = [0, 64], sizes = [2, 32], strides = [1, 1]} : vector<2x128xf32> to vector<2x32xf32>
    %131 = vector.extract_strided_slice %127 {offsets = [0, 96], sizes = [2, 32], strides = [1, 1]} : vector<2x128xf32> to vector<2x32xf32>
    %132 = arith.mulf %129, %114 : vector<2x32xf32>
    %133 = arith.mulf %128, %130 : vector<2x32xf32>
    %134 = arith.addf %132, %133 : vector<2x32xf32>
    %135 = math.tanh %134 : vector<2x32xf32>
    %136 = arith.mulf %131, %135 : vector<2x32xf32>
    %137 = vector.extract_strided_slice %7 {offsets = [0, 6, 0], sizes = [2, 1, 128], strides = [1, 1, 1]} : vector<2x8x128xf32> to vector<2x1x128xf32>
    %138 = vector.shape_cast %137 : vector<2x1x128xf32> to vector<2x128xf32>
    %cst_22 = arith.constant dense<0.000000e+00> : vector<2x128xf32>
    %139 = tpu.matmul %136, %8, %cst_22 {dimension_numbers = #tpu.dot_dimension_numbers<[1], [0], [0], [1], [0, 0, 1, 1], [], []>} : vector<2x32xf32>, vector<32x128xf32>, vector<2x128xf32> -> vector<2x128xf32>
    %140 = arith.addf %138, %139 : vector<2x128xf32>
    %141 = math.tanh %140 : vector<2x128xf32>
    %142 = arith.negf %140 : vector<2x128xf32>
    %143 = math.exp %142 : vector<2x128xf32>
    %cst_23 = arith.constant 1.000000e+00 : f32
    %144 = vector.broadcast %cst_23 : f32 to vector<2x128xf32>
    %145 = arith.addf %144, %143 : vector<2x128xf32>
    %146 = arith.divf %144, %145 : vector<2x128xf32>
    %147 = arith.select %14, %141, %146 : vector<2x128xi1>, vector<2x128xf32>
    %148 = vector.extract_strided_slice %147 {offsets = [0, 0], sizes = [2, 32], strides = [1, 1]} : vector<2x128xf32> to vector<2x32xf32>
    %149 = vector.extract_strided_slice %147 {offsets = [0, 32], sizes = [2, 32], strides = [1, 1]} : vector<2x128xf32> to vector<2x32xf32>
    %150 = vector.extract_strided_slice %147 {offsets = [0, 64], sizes = [2, 32], strides = [1, 1]} : vector<2x128xf32> to vector<2x32xf32>
    %151 = vector.extract_strided_slice %147 {offsets = [0, 96], sizes = [2, 32], strides = [1, 1]} : vector<2x128xf32> to vector<2x32xf32>
    %152 = arith.mulf %149, %134 : vector<2x32xf32>
    %153 = arith.mulf %148, %150 : vector<2x32xf32>
    %154 = arith.addf %152, %153 : vector<2x32xf32>
    %155 = math.tanh %154 : vector<2x32xf32>
    %156 = arith.mulf %151, %155 : vector<2x32xf32>
    %157 = vector.extract_strided_slice %7 {offsets = [0, 7, 0], sizes = [2, 1, 128], strides = [1, 1, 1]} : vector<2x8x128xf32> to vector<2x1x128xf32>
    %158 = vector.shape_cast %157 : vector<2x1x128xf32> to vector<2x128xf32>
    %cst_24 = arith.constant dense<0.000000e+00> : vector<2x128xf32>
    %159 = tpu.matmul %156, %8, %cst_24 {dimension_numbers = #tpu.dot_dimension_numbers<[1], [0], [0], [1], [0, 0, 1, 1], [], []>} : vector<2x32xf32>, vector<32x128xf32>, vector<2x128xf32> -> vector<2x128xf32>
    %160 = arith.addf %158, %159 : vector<2x128xf32>
    %161 = math.tanh %160 : vector<2x128xf32>
    %162 = arith.negf %160 : vector<2x128xf32>
    %163 = math.exp %162 : vector<2x128xf32>
    %cst_25 = arith.constant 1.000000e+00 : f32
    %164 = vector.broadcast %cst_25 : f32 to vector<2x128xf32>
    %165 = arith.addf %164, %163 : vector<2x128xf32>
    %166 = arith.divf %164, %165 : vector<2x128xf32>
    %167 = arith.select %14, %161, %166 : vector<2x128xi1>, vector<2x128xf32>
    %168 = vector.extract_strided_slice %167 {offsets = [0, 0], sizes = [2, 32], strides = [1, 1]} : vector<2x128xf32> to vector<2x32xf32>
    %169 = vector.extract_strided_slice %167 {offsets = [0, 32], sizes = [2, 32], strides = [1, 1]} : vector<2x128xf32> to vector<2x32xf32>
    %170 = vector.extract_strided_slice %167 {offsets = [0, 64], sizes = [2, 32], strides = [1, 1]} : vector<2x128xf32> to vector<2x32xf32>
    %171 = vector.extract_strided_slice %167 {offsets = [0, 96], sizes = [2, 32], strides = [1, 1]} : vector<2x128xf32> to vector<2x32xf32>
    %172 = arith.mulf %169, %154 : vector<2x32xf32>
    %173 = arith.mulf %168, %170 : vector<2x32xf32>
    %174 = arith.addf %172, %173 : vector<2x32xf32>
    %175 = math.tanh %174 : vector<2x32xf32>
    %176 = arith.mulf %171, %175 : vector<2x32xf32>
    %c0_26 = arith.constant 0 : index
    %c0_27 = arith.constant 0 : index
    %177 = vector.load %arg10[%c0_26, %c0_27] : memref<2x32xf32, #tpu.memory_space<vmem>>, vector<2x32xf32>
    tpu.vector_store %arg10[%c0_26, %c0_27], %176 {strides = array<i32>} : memref<2x32xf32, #tpu.memory_space<vmem>>, vector<2x32xf32>,
    %c0_28 = arith.constant 0 : index
    %c0_29 = arith.constant 0 : index
    %178 = vector.load %arg11[%c0_28, %c0_29] : memref<2x32xf32, #tpu.memory_space<vmem>>, vector<2x32xf32>
    tpu.vector_store %arg11[%c0_28, %c0_29], %174 {strides = array<i32>} : memref<2x32xf32, #tpu.memory_space<vmem>>, vector<2x32xf32>,
    %c0_30 = arith.constant 0 : index
    %c0_31 = arith.constant 0 : index
    %179 = vector.load %arg7[%c0_30, %c0_31] : memref<6x64xf32, #tpu.memory_space<vmem>>, vector<6x64xf32>
    %c0_32 = arith.constant 0 : index
    %c0_33 = arith.constant 0 : index
    %180 = vector.load %arg8[%c0_32, %c0_33] : memref<4x32xf32, #tpu.memory_space<vmem>>, vector<4x32xf32>
    %181 = vector.extract_strided_slice %179 {offsets = [0, 0], sizes = [1, 64], strides = [1, 1]} : vector<6x64xf32> to vector<1x64xf32>
    %182 = vector.extract_strided_slice %179 {offsets = [1, 0], sizes = [1, 64], strides = [1, 1]} : vector<6x64xf32> to vector<1x64xf32>
    %183 = vector.extract_strided_slice %179 {offsets = [2, 0], sizes = [1, 64], strides = [1, 1]} : vector<6x64xf32> to vector<1x64xf32>
    %184 = vector.extract_strided_slice %179 {offsets = [3, 0], sizes = [1, 64], strides = [1, 1]} : vector<6x64xf32> to vector<1x64xf32>
    %185 = vector.extract_strided_slice %179 {offsets = [4, 0], sizes = [1, 64], strides = [1, 1]} : vector<6x64xf32> to vector<1x64xf32>
    %186 = vector.extract_strided_slice %179 {offsets = [5, 0], sizes = [1, 64], strides = [1, 1]} : vector<6x64xf32> to vector<1x64xf32>
    %187 = vector.extract_strided_slice %180 {offsets = [0, 0], sizes = [1, 32], strides = [1, 1]} : vector<4x32xf32> to vector<1x32xf32>
    %188 = vector.extract_strided_slice %180 {offsets = [1, 0], sizes = [1, 32], strides = [1, 1]} : vector<4x32xf32> to vector<1x32xf32>
    %189 = vector.extract_strided_slice %180 {offsets = [2, 0], sizes = [1, 32], strides = [1, 1]} : vector<4x32xf32> to vector<1x32xf32>
    %190 = vector.extract_strided_slice %180 {offsets = [3, 0], sizes = [1, 32], strides = [1, 1]} : vector<4x32xf32> to vector<1x32xf32>
    %191 = vector.shape_cast %190 : vector<1x32xf32> to vector<1x32xf32>
    %192 = vector.broadcast %191 : vector<1x32xf32> to vector<2x32xf32>
    %193 = tpu.concatenate %176, %192 in 1 : vector<2x32xf32>, vector<2x32xf32> -> vector<2x64xf32>
    %c0_34 = arith.constant 0 : index
    %c0_35 = arith.constant 0 : index
    %194 = vector.load %arg4[%c0_34, %c0_35] : memref<32x64xf32, #tpu.memory_space<vmem>>, vector<32x64xf32>
    %cst_36 = arith.constant dense<0.000000e+00> : vector<2x64xf32>
    %195 = tpu.matmul %176, %194, %cst_36 {dimension_numbers = #tpu.dot_dimension_numbers<[1], [0], [0], [1], [0, 0, 1, 1], [], []>} : vector<2x32xf32>, vector<32x64xf32>, vector<2x64xf32> -> vector<2x64xf32>
    %196 = vector.broadcast %181 : vector<1x64xf32> to vector<2x64xf32>
    %197 = arith.addf %195, %196 : vector<2x64xf32>
    %cst_37 = arith.constant dense<0.000000e+00> : vector<2xf32>
    %198 = vector.multi_reduction <add>, %197, %cst_37 [1] : vector<2x64xf32> to vector<2xf32>
    %199 = vector.shape_cast %198 : vector<2xf32> to vector<2x1xf32>
    %cst_38 = arith.constant 6.400000e+01 : f32
    %200 = vector.broadcast %cst_38 : f32 to vector<2x1xf32>
    %201 = arith.divf %199, %200 : vector<2x1xf32>
    %202 = vector.broadcast %201 : vector<2x1xf32> to vector<2x64xf32>
    %203 = arith.subf %197, %202 : vector<2x64xf32>
    %204 = arith.mulf %203, %203 : vector<2x64xf32>
    %cst_39 = arith.constant dense<0.000000e+00> : vector<2xf32>
    %205 = vector.multi_reduction <add>, %204, %cst_39 [1] : vector<2x64xf32> to vector<2xf32>
    %206 = vector.shape_cast %205 : vector<2xf32> to vector<2x1xf32>
    %cst_40 = arith.constant 6.400000e+01 : f32
    %207 = vector.broadcast %cst_40 : f32 to vector<2x1xf32>
    %208 = arith.divf %206, %207 : vector<2x1xf32>
    %209 = vector.broadcast %201 : vector<2x1xf32> to vector<2x64xf32>
    %210 = arith.subf %197, %209 : vector<2x64xf32>
    %cst_41 = arith.constant 9.99999974E-6 : f32
    %211 = vector.broadcast %cst_41 : f32 to vector<2x1xf32>
    %212 = arith.addf %208, %211 : vector<2x1xf32>
    %213 = math.rsqrt %212 : vector<2x1xf32>
    %214 = vector.broadcast %213 : vector<2x1xf32> to vector<2x64xf32>
    %215 = arith.mulf %210, %214 : vector<2x64xf32>
    %216 = vector.broadcast %182 : vector<1x64xf32> to vector<2x64xf32>
    %217 = arith.mulf %215, %216 : vector<2x64xf32>
    %218 = vector.broadcast %183 : vector<1x64xf32> to vector<2x64xf32>
    %219 = arith.addf %217, %218 : vector<2x64xf32>
    %cst_42 = arith.constant 0.000000e+00 : f32
    %220 = vector.broadcast %cst_42 : f32 to vector<2x64xf32>
    %221 = arith.maximumf %219, %220 : vector<2x64xf32>
    %c0_43 = arith.constant 0 : index
    %c0_44 = arith.constant 0 : index
    %222 = vector.load %arg5[%c0_43, %c0_44] : memref<64x64xf32, #tpu.memory_space<vmem>>, vector<64x64xf32>
    %cst_45 = arith.constant dense<0.000000e+00> : vector<2x64xf32>
    %223 = tpu.matmul %221, %222, %cst_45 {dimension_numbers = #tpu.dot_dimension_numbers<[1], [0], [0], [1], [0, 0, 1, 1], [], []>} : vector<2x64xf32>, vector<64x64xf32>, vector<2x64xf32> -> vector<2x64xf32>
    %224 = vector.broadcast %184 : vector<1x64xf32> to vector<2x64xf32>
    %225 = arith.addf %223, %224 : vector<2x64xf32>
    %cst_46 = arith.constant dense<0.000000e+00> : vector<2xf32>
    %226 = vector.multi_reduction <add>, %225, %cst_46 [1] : vector<2x64xf32> to vector<2xf32>
    %227 = vector.shape_cast %226 : vector<2xf32> to vector<2x1xf32>
    %cst_47 = arith.constant 6.400000e+01 : f32
    %228 = vector.broadcast %cst_47 : f32 to vector<2x1xf32>
    %229 = arith.divf %227, %228 : vector<2x1xf32>
    %230 = vector.broadcast %229 : vector<2x1xf32> to vector<2x64xf32>
    %231 = arith.subf %225, %230 : vector<2x64xf32>
    %232 = arith.mulf %231, %231 : vector<2x64xf32>
    %cst_48 = arith.constant dense<0.000000e+00> : vector<2xf32>
    %233 = vector.multi_reduction <add>, %232, %cst_48 [1] : vector<2x64xf32> to vector<2xf32>
    %234 = vector.shape_cast %233 : vector<2xf32> to vector<2x1xf32>
    %cst_49 = arith.constant 6.400000e+01 : f32
    %235 = vector.broadcast %cst_49 : f32 to vector<2x1xf32>
    %236 = arith.divf %234, %235 : vector<2x1xf32>
    %237 = vector.broadcast %229 : vector<2x1xf32> to vector<2x64xf32>
    %238 = arith.subf %225, %237 : vector<2x64xf32>
    %cst_50 = arith.constant 9.99999974E-6 : f32
    %239 = vector.broadcast %cst_50 : f32 to vector<2x1xf32>
    %240 = arith.addf %236, %239 : vector<2x1xf32>
    %241 = math.rsqrt %240 : vector<2x1xf32>
    %242 = vector.broadcast %241 : vector<2x1xf32> to vector<2x64xf32>
    %243 = arith.mulf %238, %242 : vector<2x64xf32>
    %244 = vector.broadcast %185 : vector<1x64xf32> to vector<2x64xf32>
    %245 = arith.mulf %243, %244 : vector<2x64xf32>
    %246 = vector.broadcast %186 : vector<1x64xf32> to vector<2x64xf32>
    %247 = arith.addf %245, %246 : vector<2x64xf32>
    %248 = arith.negf %247 : vector<2x64xf32>
    %249 = math.exp %248 : vector<2x64xf32>
    %cst_51 = arith.constant 1.000000e+00 : f32
    %250 = vector.broadcast %cst_51 : f32 to vector<2x64xf32>
    %251 = arith.addf %250, %249 : vector<2x64xf32>
    %252 = arith.divf %250, %251 : vector<2x64xf32>
    %253 = arith.mulf %193, %252 : vector<2x64xf32>
    %c0_52 = arith.constant 0 : index
    %c0_53 = arith.constant 0 : index
    %254 = vector.load %arg6[%c0_52, %c0_53] : memref<64x32xf32, #tpu.memory_space<vmem>>, vector<64x32xf32>
    %cst_54 = arith.constant dense<0.000000e+00> : vector<2x32xf32>
    %255 = tpu.matmul %253, %254, %cst_54 {dimension_numbers = #tpu.dot_dimension_numbers<[1], [0], [0], [1], [0, 0, 1, 1], [], []>} : vector<2x64xf32>, vector<64x32xf32>, vector<2x32xf32> -> vector<2x32xf32>
    %256 = vector.broadcast %187 : vector<1x32xf32> to vector<2x32xf32>
    %257 = arith.addf %255, %256 : vector<2x32xf32>
    %cst_55 = arith.constant dense<0.000000e+00> : vector<2xf32>
    %258 = vector.multi_reduction <add>, %257, %cst_55 [1] : vector<2x32xf32> to vector<2xf32>
    %259 = vector.shape_cast %258 : vector<2xf32> to vector<2x1xf32>
    %cst_56 = arith.constant 3.200000e+01 : f32
    %260 = vector.broadcast %cst_56 : f32 to vector<2x1xf32>
    %261 = arith.divf %259, %260 : vector<2x1xf32>
    %262 = vector.broadcast %261 : vector<2x1xf32> to vector<2x32xf32>
    %263 = arith.subf %257, %262 : vector<2x32xf32>
    %264 = arith.mulf %263, %263 : vector<2x32xf32>
    %cst_57 = arith.constant dense<0.000000e+00> : vector<2xf32>
    %265 = vector.multi_reduction <add>, %264, %cst_57 [1] : vector<2x32xf32> to vector<2xf32>
    %266 = vector.shape_cast %265 : vector<2xf32> to vector<2x1xf32>
    %cst_58 = arith.constant 3.200000e+01 : f32
    %267 = vector.broadcast %cst_58 : f32 to vector<2x1xf32>
    %268 = arith.divf %266, %267 : vector<2x1xf32>
    %269 = vector.broadcast %261 : vector<2x1xf32> to vector<2x32xf32>
    %270 = arith.subf %257, %269 : vector<2x32xf32>
    %cst_59 = arith.constant 9.99999974E-6 : f32
    %271 = vector.broadcast %cst_59 : f32 to vector<2x1xf32>
    %272 = arith.addf %268, %271 : vector<2x1xf32>
    %273 = math.rsqrt %272 : vector<2x1xf32>
    %274 = vector.broadcast %273 : vector<2x1xf32> to vector<2x32xf32>
    %275 = arith.mulf %270, %274 : vector<2x32xf32>
    %276 = vector.broadcast %188 : vector<1x32xf32> to vector<2x32xf32>
    %277 = arith.mulf %275, %276 : vector<2x32xf32>
    %278 = vector.broadcast %189 : vector<1x32xf32> to vector<2x32xf32>
    %279 = arith.addf %277, %278 : vector<2x32xf32>
    %cst_60 = arith.constant 0.000000e+00 : f32
    %280 = vector.broadcast %cst_60 : f32 to vector<2x32xf32>
    %281 = arith.maximumf %279, %280 : vector<2x32xf32>
    %c0_61 = arith.constant 0 : index
    %c0_62 = arith.constant 0 : index
    %282 = vector.load %arg9[%c0_61, %c0_62] : memref<2x32xf32, #tpu.memory_space<vmem>>, vector<2x32xf32>
    tpu.vector_store %arg9[%c0_61, %c0_62], %281 {strides = array<i32>} : memref<2x32xf32, #tpu.memory_space<vmem>>, vector<2x32xf32>,
    return
  }
}

</mosaic_0001>

<llo_original>
// kernel: dual_memory_forward.1
$region0: #{dual_memory_forward.1}
  #allocation0 [shape = 'u32[]', space=smem, size = 0x4, offset = 0x4, fixed_abs, tag = 'smem constant byte address 0x4 - core index']
  #allocation1 [shape = 'u32[144,128]{1,0:T(1,128)}', space=vmem, size = 0x12000, scoped, tag = 'internal scratch']
  %s0 = inlined_call_operand.vmem [shape: f32[2,8,32], index: 0, kind: input, shape index: {}]
  %s1 = inlined_call_operand.vmem [shape: f32[32,128], index: 1, kind: input, shape index: {}]
  %s2 = inlined_call_operand.vmem [shape: f32[32,128], index: 2, kind: input, shape index: {}]
  %s3 = inlined_call_operand.vmem [shape: f32[1,128], index: 3, kind: input, shape index: {}]
  %s4 = inlined_call_operand.vmem [shape: f32[32,64], index: 4, kind: input, shape index: {}]
  %s5 = inlined_call_operand.vmem [shape: f32[64,64], index: 5, kind: input, shape index: {}]
  %s6 = inlined_call_operand.vmem [shape: f32[64,32], index: 6, kind: input, shape index: {}]
  %s7 = inlined_call_operand.vmem [shape: f32[6,64], index: 7, kind: input, shape index: {}]
  %s8 = inlined_call_operand.vmem [shape: f32[4,32], index: 8, kind: input, shape index: {}]
  %s9 = inlined_call_operand.hbm [shape: f32[2,32], index: 9, kind: output, shape index: {0}]
  %s10 = inlined_call_operand.hbm [shape: f32[2,32], index: 10, kind: output, shape index: {1}]
  %s11 = inlined_call_operand.hbm [shape: f32[2,32], index: 11, kind: output, shape index: {2}]
  %12 = xla_tuple %s9, %s10, %s11
  %s13 = sld [smem:[#allocation0]]
  $region62: #{dual_memory_forward.1} parent=0
    _
  %s15 = ssub.s32 1, %s13
  %s16 = scalar_select 0, %s15, %s13
  $region1: #{dual_memory_forward.1} parent=0
    #allocation2 [shape = 'u8[1024]{0}', space=vmem, size = 0x400, scoped, tag = 'output window, operand 0, single buffered']
    #allocation3 [shape = 's32[1]{0}', space=sflag, size = 0x4, scoped, tag = 'scoped memory for dual_memory_forward.1']
    #allocation4 [shape = 'u8[1024]{0}', space=vmem, size = 0x400, scoped, tag = 'output window, operand 1, single buffered']
    #allocation5 [shape = 's32[1]{0}', space=sflag, size = 0x4, scoped, tag = 'scoped memory for dual_memory_forward.1']
    #allocation6 [shape = 'u8[1024]{0}', space=vmem, size = 0x400, scoped, tag = 'output window, operand 2, single buffered']
    %17 = vsyncpa [#allocation3], 0
    %18 = vsyncpa [#allocation5], 0
    // Predicated region
    $region2: #{dual_memory_forward.1} parent=1 // pred_check
      _
    $region3: #{dual_memory_forward.1} parent=1 // pred_check_branch
      %20 = sbr.rel (0) target = $region5
    $region4: #{dual_memory_forward.1} parent=1 // pred_region
      _
    $region5: #{dual_memory_forward.1} parent=1 // pred_fallthru
      _
    // Predicated region
    $region6: #{dual_memory_forward.1} parent=1 // pred_check
      _
    $region7: #{dual_memory_forward.1} parent=1 // pred_check_branch
      %22 = sbr.rel (0) target = $region9
    $region8: #{dual_memory_forward.1} parent=1 // pred_region
      _
    $region9: #{dual_memory_forward.1} parent=1 // pred_fallthru
      _
    // Predicated region
    $region10: #{dual_memory_forward.1} parent=1 // pred_check
      _
    $region11: #{dual_memory_forward.1} parent=1 // pred_check_branch
      %24 = sbr.rel (0) target = $region13
    $region12: #{dual_memory_forward.1} parent=1 // pred_region
      _
    $region13: #{dual_memory_forward.1} parent=1 // pred_fallthru
      _
    // Predicated region
    $region14: #{dual_memory_forward.1} parent=1 // pred_check
      _
    $region15: #{dual_memory_forward.1} parent=1 // pred_check_branch
      %26 = sbr.rel (0) target = $region17
    $region16: #{dual_memory_forward.1} parent=1 // pred_region
      _
    $region17: #{dual_memory_forward.1} parent=1 // pred_fallthru
      _
    // Predicated region
    $region18: #{dual_memory_forward.1} parent=1 // pred_check
      _
    $region19: #{dual_memory_forward.1} parent=1 // pred_check_branch
      %28 = sbr.rel (0) target = $region21
    $region20: #{dual_memory_forward.1} parent=1 // pred_region
      _
    $region21: #{dual_memory_forward.1} parent=1 // pred_fallthru
      _
    // Predicated region
    $region22: #{dual_memory_forward.1} parent=1 // pred_check
      _
    $region23: #{dual_memory_forward.1} parent=1 // pred_check_branch
      %30 = sbr.rel (0) target = $region25
    $region24: #{dual_memory_forward.1} parent=1 // pred_region
      _
    $region25: #{dual_memory_forward.1} parent=1 // pred_fallthru
      _
    // Predicated region
    $region26: #{dual_memory_forward.1} parent=1 // pred_check
      _
    $region27: #{dual_memory_forward.1} parent=1 // pred_check_branch
      %32 = sbr.rel (0) target = $region29
    $region28: #{dual_memory_forward.1} parent=1 // pred_region
      _
    $region29: #{dual_memory_forward.1} parent=1 // pred_fallthru
      _
    // Predicated region
    $region30: #{dual_memory_forward.1} parent=1 // pred_check
      _
    $region31: #{dual_memory_forward.1} parent=1 // pred_check_branch
      %34 = sbr.rel (0) target = $region33
    $region32: #{dual_memory_forward.1} parent=1 // pred_region
      _
    $region33: #{dual_memory_forward.1} parent=1 // pred_fallthru
      _
    // Predicated region
    $region34: #{dual_memory_forward.1} parent=1 // pred_check
      _
    $region35: #{dual_memory_forward.1} parent=1 // pred_check_branch
      %36 = sbr.rel (0) target = $region37
    $region36: #{dual_memory_forward.1} parent=1 // pred_region
      _
    $region37: #{dual_memory_forward.1} parent=1 // pred_fallthru
      _
    %v37 = vld [vmem:[%s0] sm:$0xff]
    %v38 = vld [vmem:[%s0 + $0x8] sm:$0xff]
    %v39 = vld [vmem:[%s1] sm:$0xff]
    %v40 = vld [vmem:[%s1 + $0x8] sm:$0xff]
    %v41 = vld [vmem:[%s1 + $0x10] sm:$0xff]
    %v42 = vld [vmem:[%s1 + $0x18] sm:$0xff]
    %v43 = vld [vmem:[%s3] sm:$0x1]
    %v45 = vlaneseq
    %v46 = vshrl.u32 %v45, 7
    %v47 = vsub.s32 0, %v46
    %v48 = vrot.slane %v43, %v47
    %vm50 = vcmask 261120
    %v52 = vsel %vm50, %v37, 0
    %v55 = vsel %vm50, %v38, 0
    %57 = vmatprep.subr.mxu0 0.0
    %58 = vmatpush1.msra.mxu0 0.0
    %59 = vmatprep.subr.mxu0 0.0
    %60 = vmatpush1.msra.mxu0 0.0
    %61 = vmatprep.subr.mxu0 0.0
    %62 = vmatpush1.msra.mxu0 0.0
    %63 = vmatprep.subr.mxu0 0.0
    %64 = vmatpush1.msra.mxu0 0.0
    %65 = vmatprep.subr.mxu0 0.0
    %66 = vmatpush1.msra.mxu0 0.0
    %67 = vmatprep.subr.mxu0 0.0
    %68 = vmatpush1.msra.mxu0 0.0
    %69 = vmatprep.subr.mxu0 0.0
    %70 = vmatpush1.msra.mxu0 0.0
    %71 = vmatprep.subr.mxu0 0.0
    %72 = vmatpush1.msra.mxu0 0.0
    %73 = vmatprep.subr.mxu0 0.0
    %74 = vmatpush1.msra.mxu0 0.0
    %75 = vmatprep.subr.mxu0 0.0
    %76 = vmatpush1.msra.mxu0 0.0
    %77 = vmatprep.subr.mxu0 0.0
    %78 = vmatpush1.msra.mxu0 0.0
    %79 = vmatprep.subr.mxu0 0.0
    %80 = vmatpush1.msra.mxu0 0.0
    %81 = vmatprep.subr.mxu0 0.0
    %82 = vmatpush1.msra.mxu0 %v42
    %83 = vmatprep.subr.mxu0 0.0
    %84 = vmatpush1.msra.mxu0 %v41
    %85 = vmatprep.subr.mxu0 0.0
    %86 = vmatpush1.msra.mxu0 %v40
    %87 = vmatprep.subr.mxu0 0.0
    %88 = vmatpush1.msra.mxu0 %v39
    %89 = vmatprep.subr.mxu0 0.0
    %90 = vmatpush2.msra.mxu0 0.0
    %91 = vmatprep.subr.mxu0 0.0
    %92 = vmatpush2.msra.mxu0 0.0
    %93 = vmatprep.subr.mxu0 0.0
    %94 = vmatpush2.msra.mxu0 0.0
    %95 = vmatprep.subr.mxu0 0.0
    %96 = vmatpush2.msra.mxu0 0.0
    %97 = vmatprep.subr.mxu0 0.0
    %98 = vmatpush2.msra.mxu0 0.0
    %99 = vmatprep.subr.mxu0 0.0
    %100 = vmatpush2.msra.mxu0 0.0
    %101 = vmatprep.subr.mxu0 0.0
    %102 = vmatpush2.msra.mxu0 0.0
    %103 = vmatprep.subr.mxu0 0.0
    %104 = vmatpush2.msra.mxu0 0.0
    %105 = vmatprep.subr.mxu0 0.0
    %106 = vmatpush2.msra.mxu0 0.0
    %107 = vmatprep.subr.mxu0 0.0
    %108 = vmatpush2.msra.mxu0 0.0
    %109 = vmatprep.subr.mxu0 0.0
    %110 = vmatpush2.msra.mxu0 0.0
    %111 = vmatprep.subr.mxu0 0.0
    %112 = vmatpush2.msra.mxu0 0.0
    %113 = vmatprep.subr.mxu0 0.0
    %114 = vmatpush2.msra.mxu0 0.0
    %115 = vmatprep.subr.mxu0 0.0
    %116 = vmatpush2.msra.mxu0 0.0
    %117 = vmatprep.subr.mxu0 0.0
    %118 = vmatpush2.msra.mxu0 0.0
    %119 = vmatprep.subr.mxu0 0.0
    %120 = vmatpush2.msra.mxu0 0.0
    %121 = vmatprep.mubr.f32.mxu0 0.0
    %122 = vmatmul.mubr.f32.gmra.mxu0 %v52
    %v123 = vpop.f32.mrf.mxu0
    %v124 = vadd.f32 %v48, %v123
    %v125 = vpop.f32.mrf.mxu0
    %126 = vmatprep.mubr.f32.mxu0 0.0
    %127 = vmatmul.mubr.f32.gmra.mxu0 %v55
    %v128 = vpop.f32.mrf.mxu0
    %v129 = vadd.f32 %v48, %v128
    %v130 = vpop.f32.mrf.mxu0
    %131 = vdwg.mxu0
    %v132 = vld [vmem:[%s2] sm:$0xff]
    %v133 = vld [vmem:[%s2 + $0x8] sm:$0xff]
    %v134 = vld [vmem:[%s2 + $0x10] sm:$0xff]
    %v135 = vld [vmem:[%s2 + $0x18] sm:$0xff]
    %v136 = vlaneseq
    %v137 = vand.u32 %v136, 127
    %vm138 = vcmp.ge.s32.totalorder %v137, 64
    %vm139 = vcmp.lt.s32.totalorder %v137, 96
    %vm140 = vmand %vm138, %vm139
    %v142 = vsel %vm50, 0.0, 0
    %144 = vmatprep.subr.mxu0 0.0
    %145 = vmatpush1.msra.mxu0 0.0
    %146 = vmatprep.subr.mxu0 0.0
    %147 = vmatpush1.msra.mxu0 0.0
    %148 = vmatprep.subr.mxu0 0.0
    %149 = vmatpush1.msra.mxu0 0.0
    %150 = vmatprep.subr.mxu0 0.0
    %151 = vmatpush1.msra.mxu0 0.0
    %152 = vmatprep.subr.mxu0 0.0
    %153 = vmatpush1.msra.mxu0 0.0
    %154 = vmatprep.subr.mxu0 0.0
    %155 = vmatpush1.msra.mxu0 0.0
    %156 = vmatprep.subr.mxu0 0.0
    %157 = vmatpush1.msra.mxu0 0.0
    %158 = vmatprep.subr.mxu0 0.0
    %159 = vmatpush1.msra.mxu0 0.0
    %160 = vmatprep.subr.mxu0 0.0
    %161 = vmatpush1.msra.mxu0 0.0
    %162 = vmatprep.subr.mxu0 0.0
    %163 = vmatpush1.msra.mxu0 0.0
    %164 = vmatprep.subr.mxu0 0.0
    %165 = vmatpush1.msra.mxu0 0.0
    %166 = vmatprep.subr.mxu0 0.0
    %167 = vmatpush1.msra.mxu0 0.0
    %168 = vmatprep.subr.mxu0 0.0
    %169 = vmatpush1.msra.mxu0 %v135
    %170 = vmatprep.subr.mxu0 0.0
    %171 = vmatpush1.msra.mxu0 %v134
    %172 = vmatprep.subr.mxu0 0.0
    %173 = vmatpush1.msra.mxu0 %v133
    %174 = vmatprep.subr.mxu0 0.0
    %175 = vmatpush1.msra.mxu0 %v132
    %176 = vmatprep.subr.mxu0 0.0
    %177 = vmatpush2.msra.mxu0 0.0
    %178 = vmatprep.subr.mxu0 0.0
    %179 = vmatpush2.msra.mxu0 0.0
    %180 = vmatprep.subr.mxu0 0.0
    %181 = vmatpush2.msra.mxu0 0.0
    %182 = vmatprep.subr.mxu0 0.0
    %183 = vmatpush2.msra.mxu0 0.0
    %184 = vmatprep.subr.mxu0 0.0
    %185 = vmatpush2.msra.mxu0 0.0
    %186 = vmatprep.subr.mxu0 0.0
    %187 = vmatpush2.msra.mxu0 0.0
    %188 = vmatprep.subr.mxu0 0.0
    %189 = vmatpush2.msra.mxu0 0.0
    %190 = vmatprep.subr.mxu0 0.0
    %191 = vmatpush2.msra.mxu0 0.0
    %192 = vmatprep.subr.mxu0 0.0
    %193 = vmatpush2.msra.mxu0 0.0
    %194 = vmatprep.subr.mxu0 0.0
    %195 = vmatpush2.msra.mxu0 0.0
    %196 = vmatprep.subr.mxu0 0.0
    %197 = vmatpush2.msra.mxu0 0.0
    %198 = vmatprep.subr.mxu0 0.0
    %199 = vmatpush2.msra.mxu0 0.0
    %200 = vmatprep.subr.mxu0 0.0
    %201 = vmatpush2.msra.mxu0 0.0
    %202 = vmatprep.subr.mxu0 0.0
    %203 = vmatpush2.msra.mxu0 0.0
    %204 = vmatprep.subr.mxu0 0.0
    %205 = vmatpush2.msra.mxu0 0.0
    %206 = vmatprep.subr.mxu0 0.0
    %207 = vmatpush2.msra.mxu0 0.0
    %208 = vmatprep.mubr.f32.mxu0 0.0
    %209 = vmatmul.mubr.f32.gmra.mxu0 %v142
    %v210 = vpop.f32.mrf.mxu0
    %v211 = vadd.f32 0.0, %v210
    %v212 = vpop.f32.mrf.mxu0
    %213 = vdwg.mxu0
    %v215 = vrot.slane %v211, 1
    %v218 = vadd.f32 %v124, %v211
    %v219 = vadd.f32 %v129, %v215
    %v220 = vtanh.pop %v218
    %v221 = vtanh.pop %v219
    %v222 = vxor.u32 %v218, 2147483648
    %v223 = vxor.u32 %v219, 2147483648
    %v224 = vmul.f32 %v222, 1.442695
    %v225 = vpow.pop %v224
    %v226 = vmul.f32 %v223, 1.442695
    %v227 = vpow.pop %v226
    %v228 = vadd.f32 %v225, 1.0
    %v229 = vadd.f32 %v227, 1.0
    %v230 = vrcp.pop %v228
    %v231 = vmul.f32 1.0, %v230
    %v232 = vrcp.pop %v229
    %v233 = vmul.f32 1.0, %v232
    %v236 = vrot.slane %v221, 7
    %vm237 = vcmask 1041409
    %v238 = vsel %vm237, %v236, %v220
    %v242 = vrot.slane %v233, 7
    %v243 = vsel %vm237, %v242, %v231
    %v245 = vsel %vm140, %v238, %v243
    %v246 = vmul.f32 %v245, 0.0
    %248 = vrot.lane.b32.xlu0 %v245, 64
    %v249 = vpop.permute.xlu0 %248
    %v251 = vmul.f32 %v245, %v249
    %253 = vrot.lane.b32.xlu0 %v251, 32
    %v254 = vpop.permute.xlu0 %253
    %v256 = vadd.f32 %v246, %v254
    %v257 = vtanh.pop %v256
    %259 = vrot.lane.b32.xlu0 %v257, 64
    %v260 = vpop.permute.xlu0 %259
    %v262 = vmul.f32 %v245, %v260
    %264 = vrot.lane.b32.xlu0 %v262, 32
    %v265 = vpop.permute.xlu0 %264
    %v266 = vsel %vm50, %v265, 0
    %268 = vmatprep.subr.mxu0 0.0
    %269 = vmatpush1.msra.mxu0 0.0
    %270 = vmatprep.subr.mxu0 0.0
    %271 = vmatpush1.msra.mxu0 0.0
    %272 = vmatprep.subr.mxu0 0.0
    %273 = vmatpush1.msra.mxu0 0.0
    %274 = vmatprep.subr.mxu0 0.0
    %275 = vmatpush1.msra.mxu0 0.0
    %276 = vmatprep.subr.mxu0 0.0
    %277 = vmatpush1.msra.mxu0 0.0
    %278 = vmatprep.subr.mxu0 0.0
    %279 = vmatpush1.msra.mxu0 0.0
    %280 = vmatprep.subr.mxu0 0.0
    %281 = vmatpush1.msra.mxu0 0.0
    %282 = vmatprep.subr.mxu0 0.0
    %283 = vmatpush1.msra.mxu0 0.0
    %284 = vmatprep.subr.mxu0 0.0
    %285 = vmatpush1.msra.mxu0 0.0
    %286 = vmatprep.subr.mxu0 0.0
    %287 = vmatpush1.msra.mxu0 0.0
    %288 = vmatprep.subr.mxu0 0.0
    %289 = vmatpush1.msra.mxu0 0.0
    %290 = vmatprep.subr.mxu0 0.0
    %291 = vmatpush1.msra.mxu0 0.0
    %292 = vmatprep.subr.mxu0 0.0
    %293 = vmatpush1.msra.mxu0 %v135
    %294 = vmatprep.subr.mxu0 0.0
    %295 = vmatpush1.msra.mxu0 %v134
    %296 = vmatprep.subr.mxu0 0.0
    %297 = vmatpush1.msra.mxu0 %v133
    %298 = vmatprep.subr.mxu0 0.0
    %299 = vmatpush1.msra.mxu0 %v132
    %300 = vmatprep.subr.mxu0 0.0
    %301 = vmatpush2.msra.mxu0 0.0
    %302 = vmatprep.subr.mxu0 0.0
    %303 = vmatpush2.msra.mxu0 0.0
    %304 = vmatprep.subr.mxu0 0.0
    %305 = vmatpush2.msra.mxu0 0.0
    %306 = vmatprep.subr.mxu0 0.0
    %307 = vmatpush2.msra.mxu0 0.0
    %308 = vmatprep.subr.mxu0 0.0
    %309 = vmatpush2.msra.mxu0 0.0
    %310 = vmatprep.subr.mxu0 0.0
    %311 = vmatpush2.msra.mxu0 0.0
    %312 = vmatprep.subr.mxu0 0.0
    %313 = vmatpush2.msra.mxu0 0.0
    %314 = vmatprep.subr.mxu0 0.0
    %315 = vmatpush2.msra.mxu0 0.0
    %316 = vmatprep.subr.mxu0 0.0
    %317 = vmatpush2.msra.mxu0 0.0
    %318 = vmatprep.subr.mxu0 0.0
    %319 = vmatpush2.msra.mxu0 0.0
    %320 = vmatprep.subr.mxu0 0.0
    %321 = vmatpush2.msra.mxu0 0.0
    %322 = vmatprep.subr.mxu0 0.0
    %323 = vmatpush2.msra.mxu0 0.0
    %324 = vmatprep.subr.mxu0 0.0
    %325 = vmatpush2.msra.mxu0 0.0
    %326 = vmatprep.subr.mxu0 0.0
    %327 = vmatpush2.msra.mxu0 0.0
    %328 = vmatprep.subr.mxu0 0.0
    %329 = vmatpush2.msra.mxu0 0.0
    %330 = vmatprep.subr.mxu0 0.0
    %331 = vmatpush2.msra.mxu0 0.0
    %332 = vmatprep.mubr.f32.mxu0 0.0
    %333 = vmatmul.mubr.f32.gmra.mxu0 %v266
    %v334 = vpop.f32.mrf.mxu0
    %v335 = vadd.f32 0.0, %v334
    %v336 = vpop.f32.mrf.mxu0
    %337 = vdwg.mxu0
    %v339 = vrot.slane %v335, 7
    %v342 = vadd.f32 %v124, %v339
    %v343 = vadd.f32 %v129, %v335
    %v344 = vtanh.pop %v342
    %v345 = vtanh.pop %v343
    %v346 = vxor.u32 %v342, 2147483648
    %v347 = vxor.u32 %v343, 2147483648
    %v348 = vmul.f32 %v346, 1.442695
    %v349 = vpow.pop %v348
    %v350 = vmul.f32 %v347, 1.442695
    %v351 = vpow.pop %v350
    %v352 = vadd.f32 %v349, 1.0
    %v353 = vadd.f32 %v351, 1.0
    %v354 = vrcp.pop %v352
    %v355 = vmul.f32 1.0, %v354
    %v356 = vrcp.pop %v353
    %v357 = vmul.f32 1.0, %v356
    %v360 = vrot.slane %v344, 1
    %v361 = vsel %vm237, %v345, %v360
    %v365 = vrot.slane %v355, 1
    %v366 = vsel %vm237, %v357, %v365
    %v368 = vsel %vm140, %v361, %v366
    %v369 = vmul.f32 %v368, %v256
    %371 = vrot.lane.b32.xlu0 %v368, 64
    %v372 = vpop.permute.xlu0 %371
    %v374 = vmul.f32 %v368, %v372
    %376 = vrot.lane.b32.xlu0 %v374, 32
    %v377 = vpop.permute.xlu0 %376
    %v379 = vadd.f32 %v369, %v377
    %v380 = vtanh.pop %v379
    %382 = vrot.lane.b32.xlu0 %v380, 64
    %v383 = vpop.permute.xlu0 %382
    %v385 = vmul.f32 %v368, %v383
    %387 = vrot.lane.b32.xlu0 %v385, 32
    %v388 = vpop.permute.xlu0 %387
    %v389 = vsel %vm50, %v388, 0
    %391 = vmatprep.subr.mxu0 0.0
    %392 = vmatpush1.msra.mxu0 0.0
    %393 = vmatprep.subr.mxu0 0.0
    %394 = vmatpush1.msra.mxu0 0.0
    %395 = vmatprep.subr.mxu0 0.0
    %396 = vmatpush1.msra.mxu0 0.0
    %397 = vmatprep.subr.mxu0 0.0
    %398 = vmatpush1.msra.mxu0 0.0
    %399 = vmatprep.subr.mxu0 0.0
    %400 = vmatpush1.msra.mxu0 0.0
    %401 = vmatprep.subr.mxu0 0.0
    %402 = vmatpush1.msra.mxu0 0.0
    %403 = vmatprep.subr.mxu0 0.0
    %404 = vmatpush1.msra.mxu0 0.0
    %405 = vmatprep.subr.mxu0 0.0
    %406 = vmatpush1.msra.mxu0 0.0
    %407 = vmatprep.subr.mxu0 0.0
    %408 = vmatpush1.msra.mxu0 0.0
    %409 = vmatprep.subr.mxu0 0.0
    %410 = vmatpush1.msra.mxu0 0.0
    %411 = vmatprep.subr.mxu0 0.0
    %412 = vmatpush1.msra.mxu0 0.0
    %413 = vmatprep.subr.mxu0 0.0
    %414 = vmatpush1.msra.mxu0 0.0
    %415 = vmatprep.subr.mxu0 0.0
    %416 = vmatpush1.msra.mxu0 %v135
    %417 = vmatprep.subr.mxu0 0.0
    %418 = vmatpush1.msra.mxu0 %v134
    %419 = vmatprep.subr.mxu0 0.0
    %420 = vmatpush1.msra.mxu0 %v133
    %421 = vmatprep.subr.mxu0 0.0
    %422 = vmatpush1.msra.mxu0 %v132
    %423 = vmatprep.subr.mxu0 0.0
    %424 = vmatpush2.msra.mxu0 0.0
    %425 = vmatprep.subr.mxu0 0.0
    %426 = vmatpush2.msra.mxu0 0.0
    %427 = vmatprep.subr.mxu0 0.0
    %428 = vmatpush2.msra.mxu0 0.0
    %429 = vmatprep.subr.mxu0 0.0
    %430 = vmatpush2.msra.mxu0 0.0
    %431 = vmatprep.subr.mxu0 0.0
    %432 = vmatpush2.msra.mxu0 0.0
    %433 = vmatprep.subr.mxu0 0.0
    %434 = vmatpush2.msra.mxu0 0.0
    %435 = vmatprep.subr.mxu0 0.0
    %436 = vmatpush2.msra.mxu0 0.0
    %437 = vmatprep.subr.mxu0 0.0
    %438 = vmatpush2.msra.mxu0 0.0
    %439 = vmatprep.subr.mxu0 0.0
    %440 = vmatpush2.msra.mxu0 0.0
    %441 = vmatprep.subr.mxu0 0.0
    %442 = vmatpush2.msra.mxu0 0.0
    %443 = vmatprep.subr.mxu0 0.0
    %444 = vmatpush2.msra.mxu0 0.0
    %445 = vmatprep.subr.mxu0 0.0
    %446 = vmatpush2.msra.mxu0 0.0
    %447 = vmatprep.subr.mxu0 0.0
    %448 = vmatpush2.msra.mxu0 0.0
    %449 = vmatprep.subr.mxu0 0.0
    %450 = vmatpush2.msra.mxu0 0.0
    %451 = vmatprep.subr.mxu0 0.0
    %452 = vmatpush2.msra.mxu0 0.0
    %453 = vmatprep.subr.mxu0 0.0
    %454 = vmatpush2.msra.mxu0 0.0
    %455 = vmatprep.mubr.f32.mxu0 0.0
    %456 = vmatmul.mubr.f32.gmra.mxu0 %v389
    %v457 = vpop.f32.mrf.mxu0
    %v458 = vadd.f32 0.0, %v457
    %v459 = vpop.f32.mrf.mxu0
    %460 = vdwg.mxu0
    %v462 = vrot.slane %v458, 6
    %v463 = vrot.slane %v458, 7
    %v466 = vadd.f32 %v124, %v462
    %v467 = vadd.f32 %v129, %v463
    %v468 = vtanh.pop %v466
    %v469 = vtanh.pop %v467
    %v470 = vxor.u32 %v466, 2147483648
    %v471 = vxor.u32 %v467, 2147483648
    %v472 = vmul.f32 %v470, 1.442695
    %v473 = vpow.pop %v472
    %v474 = vmul.f32 %v471, 1.442695
    %v475 = vpow.pop %v474
    %v476 = vadd.f32 %v473, 1.0
    %v477 = vadd.f32 %v475, 1.0
    %v478 = vrcp.pop %v476
    %v479 = vmul.f32 1.0, %v478
    %v480 = vrcp.pop %v477
    %v481 = vmul.f32 1.0, %v480
    %v484 = vrot.slane %v468, 2
    %v485 = vrot.slane %v469, 1
    %v486 = vsel %vm237, %v485, %v484
    %v490 = vrot.slane %v479, 2
    %v491 = vrot.slane %v481, 1
    %v492 = vsel %vm237, %v491, %v490
    %v494 = vsel %vm140, %v486, %v492
    %v495 = vmul.f32 %v494, %v379
    %497 = vrot.lane.b32.xlu0 %v494, 64
    %v498 = vpop.permute.xlu0 %497
    %v500 = vmul.f32 %v494, %v498
    %502 = vrot.lane.b32.xlu0 %v500, 32
    %v503 = vpop.permute.xlu0 %502
    %v505 = vadd.f32 %v495, %v503
    %v506 = vtanh.pop %v505
    %508 = vrot.lane.b32.xlu0 %v506, 64
    %v509 = vpop.permute.xlu0 %508
    %v511 = vmul.f32 %v494, %v509
    %513 = vrot.lane.b32.xlu0 %v511, 32
    %v514 = vpop.permute.xlu0 %513
    %v515 = vsel %vm50, %v514, 0
    %517 = vmatprep.subr.mxu0 0.0
    %518 = vmatpush1.msra.mxu0 0.0
    %519 = vmatprep.subr.mxu0 0.0
    %520 = vmatpush1.msra.mxu0 0.0
    %521 = vmatprep.subr.mxu0 0.0
    %522 = vmatpush1.msra.mxu0 0.0
    %523 = vmatprep.subr.mxu0 0.0
    %524 = vmatpush1.msra.mxu0 0.0
    %525 = vmatprep.subr.mxu0 0.0
    %526 = vmatpush1.msra.mxu0 0.0
    %527 = vmatprep.subr.mxu0 0.0
    %528 = vmatpush1.msra.mxu0 0.0
    %529 = vmatprep.subr.mxu0 0.0
    %530 = vmatpush1.msra.mxu0 0.0
    %531 = vmatprep.subr.mxu0 0.0
    %532 = vmatpush1.msra.mxu0 0.0
    %533 = vmatprep.subr.mxu0 0.0
    %534 = vmatpush1.msra.mxu0 0.0
    %535 = vmatprep.subr.mxu0 0.0
    %536 = vmatpush1.msra.mxu0 0.0
    %537 = vmatprep.subr.mxu0 0.0
    %538 = vmatpush1.msra.mxu0 0.0
    %539 = vmatprep.subr.mxu0 0.0
    %540 = vmatpush1.msra.mxu0 0.0
    %541 = vmatprep.subr.mxu0 0.0
    %542 = vmatpush1.msra.mxu0 %v135
    %543 = vmatprep.subr.mxu0 0.0
    %544 = vmatpush1.msra.mxu0 %v134
    %545 = vmatprep.subr.mxu0 0.0
    %546 = vmatpush1.msra.mxu0 %v133
    %547 = vmatprep.subr.mxu0 0.0
    %548 = vmatpush1.msra.mxu0 %v132
    %549 = vmatprep.subr.mxu0 0.0
    %550 = vmatpush2.msra.mxu0 0.0
    %551 = vmatprep.subr.mxu0 0.0
    %552 = vmatpush2.msra.mxu0 0.0
    %553 = vmatprep.subr.mxu0 0.0
    %554 = vmatpush2.msra.mxu0 0.0
    %555 = vmatprep.subr.mxu0 0.0
    %556 = vmatpush2.msra.mxu0 0.0
    %557 = vmatprep.subr.mxu0 0.0
    %558 = vmatpush2.msra.mxu0 0.0
    %559 = vmatprep.subr.mxu0 0.0
    %560 = vmatpush2.msra.mxu0 0.0
    %561 = vmatprep.subr.mxu0 0.0
    %562 = vmatpush2.msra.mxu0 0.0
    %563 = vmatprep.subr.mxu0 0.0
    %564 = vmatpush2.msra.mxu0 0.0
    %565 = vmatprep.subr.mxu0 0.0
    %566 = vmatpush2.msra.mxu0 0.0
    %567 = vmatprep.subr.mxu0 0.0
    %568 = vmatpush2.msra.mxu0 0.0
    %569 = vmatprep.subr.mxu0 0.0
    %570 = vmatpush2.msra.mxu0 0.0
    %571 = vmatprep.subr.mxu0 0.0
    %572 = vmatpush2.msra.mxu0 0.0
    %573 = vmatprep.subr.mxu0 0.0
    %574 = vmatpush2.msra.mxu0 0.0
    %575 = vmatprep.subr.mxu0 0.0
    %576 = vmatpush2.msra.mxu0 0.0
    %577 = vmatprep.subr.mxu0 0.0
    %578 = vmatpush2.msra.mxu0 0.0
    %579 = vmatprep.subr.mxu0 0.0
    %580 = vmatpush2.msra.mxu0 0.0
    %581 = vmatprep.mubr.f32.mxu0 0.0
    %582 = vmatmul.mubr.f32.gmra.mxu0 %v515
    %v583 = vpop.f32.mrf.mxu0
    %v584 = vadd.f32 0.0, %v583
    %v585 = vpop.f32.mrf.mxu0
    %586 = vdwg.mxu0
    %v588 = vrot.slane %v584, 5
    %v589 = vrot.slane %v584, 6
    %v592 = vadd.f32 %v124, %v588
    %v593 = vadd.f32 %v129, %v589
    %v594 = vtanh.pop %v592
    %v595 = vtanh.pop %v593
    %v596 = vxor.u32 %v592, 2147483648
    %v597 = vxor.u32 %v593, 2147483648
    %v598 = vmul.f32 %v596, 1.442695
    %v599 = vpow.pop %v598
    %v600 = vmul.f32 %v597, 1.442695
    %v601 = vpow.pop %v600
    %v602 = vadd.f32 %v599, 1.0
    %v603 = vadd.f32 %v601, 1.0
    %v604 = vrcp.pop %v602
    %v605 = vmul.f32 1.0, %v604
    %v606 = vrcp.pop %v603
    %v607 = vmul.f32 1.0, %v606
    %v610 = vrot.slane %v594, 3
    %v611 = vrot.slane %v595, 2
    %v612 = vsel %vm237, %v611, %v610
    %v616 = vrot.slane %v605, 3
    %v617 = vrot.slane %v607, 2
    %v618 = vsel %vm237, %v617, %v616
    %v620 = vsel %vm140, %v612, %v618
    %v621 = vmul.f32 %v620, %v505
    %623 = vrot.lane.b32.xlu0 %v620, 64
    %v624 = vpop.permute.xlu0 %623
    %v626 = vmul.f32 %v620, %v624
    %628 = vrot.lane.b32.xlu0 %v626, 32
    %v629 = vpop.permute.xlu0 %628
    %v631 = vadd.f32 %v621, %v629
    %v632 = vtanh.pop %v631
    %634 = vrot.lane.b32.xlu0 %v632, 64
    %v635 = vpop.permute.xlu0 %634
    %v637 = vmul.f32 %v620, %v635
    %639 = vrot.lane.b32.xlu0 %v637, 32
    %v640 = vpop.permute.xlu0 %639
    %v641 = vsel %vm50, %v640, 0
    %643 = vmatprep.subr.mxu0 0.0
    %644 = vmatpush1.msra.mxu0 0.0
    %645 = vmatprep.subr.mxu0 0.0
    %646 = vmatpush1.msra.mxu0 0.0
    %647 = vmatprep.subr.mxu0 0.0
    %648 = vmatpush1.msra.mxu0 0.0
    %649 = vmatprep.subr.mxu0 0.0
    %650 = vmatpush1.msra.mxu0 0.0
    %651 = vmatprep.subr.mxu0 0.0
    %652 = vmatpush1.msra.mxu0 0.0
    %653 = vmatprep.subr.mxu0 0.0
    %654 = vmatpush1.msra.mxu0 0.0
    %655 = vmatprep.subr.mxu0 0.0
    %656 = vmatpush1.msra.mxu0 0.0
    %657 = vmatprep.subr.mxu0 0.0
    %658 = vmatpush1.msra.mxu0 0.0
    %659 = vmatprep.subr.mxu0 0.0
    %660 = vmatpush1.msra.mxu0 0.0
    %661 = vmatprep.subr.mxu0 0.0
    %662 = vmatpush1.msra.mxu0 0.0
    %663 = vmatprep.subr.mxu0 0.0
    %664 = vmatpush1.msra.mxu0 0.0
    %665 = vmatprep.subr.mxu0 0.0
    %666 = vmatpush1.msra.mxu0 0.0
    %667 = vmatprep.subr.mxu0 0.0
    %668 = vmatpush1.msra.mxu0 %v135
    %669 = vmatprep.subr.mxu0 0.0
    %670 = vmatpush1.msra.mxu0 %v134
    %671 = vmatprep.subr.mxu0 0.0
    %672 = vmatpush1.msra.mxu0 %v133
    %673 = vmatprep.subr.mxu0 0.0
    %674 = vmatpush1.msra.mxu0 %v132
    %675 = vmatprep.subr.mxu0 0.0
    %676 = vmatpush2.msra.mxu0 0.0
    %677 = vmatprep.subr.mxu0 0.0
    %678 = vmatpush2.msra.mxu0 0.0
    %679 = vmatprep.subr.mxu0 0.0
    %680 = vmatpush2.msra.mxu0 0.0
    %681 = vmatprep.subr.mxu0 0.0
    %682 = vmatpush2.msra.mxu0 0.0
    %683 = vmatprep.subr.mxu0 0.0
    %684 = vmatpush2.msra.mxu0 0.0
    %685 = vmatprep.subr.mxu0 0.0
    %686 = vmatpush2.msra.mxu0 0.0
    %687 = vmatprep.subr.mxu0 0.0
    %688 = vmatpush2.msra.mxu0 0.0
    %689 = vmatprep.subr.mxu0 0.0
    %690 = vmatpush2.msra.mxu0 0.0
    %691 = vmatprep.subr.mxu0 0.0
    %692 = vmatpush2.msra.mxu0 0.0
    %693 = vmatprep.subr.mxu0 0.0
    %694 = vmatpush2.msra.mxu0 0.0
    %695 = vmatprep.subr.mxu0 0.0
    %696 = vmatpush2.msra.mxu0 0.0
    %697 = vmatprep.subr.mxu0 0.0
    %698 = vmatpush2.msra.mxu0 0.0
    %699 = vmatprep.subr.mxu0 0.0
    %700 = vmatpush2.msra.mxu0 0.0
    %701 = vmatprep.subr.mxu0 0.0
    %702 = vmatpush2.msra.mxu0 0.0
    %703 = vmatprep.subr.mxu0 0.0
    %704 = vmatpush2.msra.mxu0 0.0
    %705 = vmatprep.subr.mxu0 0.0
    %706 = vmatpush2.msra.mxu0 0.0
    %707 = vmatprep.mubr.f32.mxu0 0.0
    %708 = vmatmul.mubr.f32.gmra.mxu0 %v641
    %v709 = vpop.f32.mrf.mxu0
    %v710 = vadd.f32 0.0, %v709
    %v711 = vpop.f32.mrf.mxu0
    %712 = vdwg.mxu0
    %v714 = vrot.slane %v710, 4
    %v715 = vrot.slane %v710, 5
    %v718 = vadd.f32 %v124, %v714
    %v719 = vadd.f32 %v129, %v715
    %v720 = vtanh.pop %v718
    %v721 = vtanh.pop %v719
    %v722 = vxor.u32 %v718, 2147483648
    %v723 = vxor.u32 %v719, 2147483648
    %v724 = vmul.f32 %v722, 1.442695
    %v725 = vpow.pop %v724
    %v726 = vmul.f32 %v723, 1.442695
    %v727 = vpow.pop %v726
    %v728 = vadd.f32 %v725, 1.0
    %v729 = vadd.f32 %v727, 1.0
    %v730 = vrcp.pop %v728
    %v731 = vmul.f32 1.0, %v730
    %v732 = vrcp.pop %v729
    %v733 = vmul.f32 1.0, %v732
    %v736 = vrot.slane %v720, 4
    %v737 = vrot.slane %v721, 3
    %v738 = vsel %vm237, %v737, %v736
    %v742 = vrot.slane %v731, 4
    %v743 = vrot.slane %v733, 3
    %v744 = vsel %vm237, %v743, %v742
    %v746 = vsel %vm140, %v738, %v744
    %v747 = vmul.f32 %v746, %v631
    %749 = vrot.lane.b32.xlu0 %v746, 64
    %v750 = vpop.permute.xlu0 %749
    %v752 = vmul.f32 %v746, %v750
    %754 = vrot.lane.b32.xlu0 %v752, 32
    %v755 = vpop.permute.xlu0 %754
    %v757 = vadd.f32 %v747, %v755
    %v758 = vtanh.pop %v757
    %760 = vrot.lane.b32.xlu0 %v758, 64
    %v761 = vpop.permute.xlu0 %760
    %v763 = vmul.f32 %v746, %v761
    %765 = vrot.lane.b32.xlu0 %v763, 32
    %v766 = vpop.permute.xlu0 %765
    %v767 = vsel %vm50, %v766, 0
    %769 = vmatprep.subr.mxu0 0.0
    %770 = vmatpush1.msra.mxu0 0.0
    %771 = vmatprep.subr.mxu0 0.0
    %772 = vmatpush1.msra.mxu0 0.0
    %773 = vmatprep.subr.mxu0 0.0
    %774 = vmatpush1.msra.mxu0 0.0
    %775 = vmatprep.subr.mxu0 0.0
    %776 = vmatpush1.msra.mxu0 0.0
    %777 = vmatprep.subr.mxu0 0.0
    %778 = vmatpush1.msra.mxu0 0.0
    %779 = vmatprep.subr.mxu0 0.0
    %780 = vmatpush1.msra.mxu0 0.0
    %781 = vmatprep.subr.mxu0 0.0
    %782 = vmatpush1.msra.mxu0 0.0
    %783 = vmatprep.subr.mxu0 0.0
    %784 = vmatpush1.msra.mxu0 0.0
    %785 = vmatprep.subr.mxu0 0.0
    %786 = vmatpush1.msra.mxu0 0.0
    %787 = vmatprep.subr.mxu0 0.0
    %788 = vmatpush1.msra.mxu0 0.0
    %789 = vmatprep.subr.mxu0 0.0
    %790 = vmatpush1.msra.mxu0 0.0
    %791 = vmatprep.subr.mxu0 0.0
    %792 = vmatpush1.msra.mxu0 0.0
    %793 = vmatprep.subr.mxu0 0.0
    %794 = vmatpush1.msra.mxu0 %v135
    %795 = vmatprep.subr.mxu0 0.0
    %796 = vmatpush1.msra.mxu0 %v134
    %797 = vmatprep.subr.mxu0 0.0
    %798 = vmatpush1.msra.mxu0 %v133
    %799 = vmatprep.subr.mxu0 0.0
    %800 = vmatpush1.msra.mxu0 %v132
    %801 = vmatprep.subr.mxu0 0.0
    %802 = vmatpush2.msra.mxu0 0.0
    %803 = vmatprep.subr.mxu0 0.0
    %804 = vmatpush2.msra.mxu0 0.0
    %805 = vmatprep.subr.mxu0 0.0
    %806 = vmatpush2.msra.mxu0 0.0
    %807 = vmatprep.subr.mxu0 0.0
    %808 = vmatpush2.msra.mxu0 0.0
    %809 = vmatprep.subr.mxu0 0.0
    %810 = vmatpush2.msra.mxu0 0.0
    %811 = vmatprep.subr.mxu0 0.0
    %812 = vmatpush2.msra.mxu0 0.0
    %813 = vmatprep.subr.mxu0 0.0
    %814 = vmatpush2.msra.mxu0 0.0
    %815 = vmatprep.subr.mxu0 0.0
    %816 = vmatpush2.msra.mxu0 0.0
    %817 = vmatprep.subr.mxu0 0.0
    %818 = vmatpush2.msra.mxu0 0.0
    %819 = vmatprep.subr.mxu0 0.0
    %820 = vmatpush2.msra.mxu0 0.0
    %821 = vmatprep.subr.mxu0 0.0
    %822 = vmatpush2.msra.mxu0 0.0
    %823 = vmatprep.subr.mxu0 0.0
    %824 = vmatpush2.msra.mxu0 0.0
    %825 = vmatprep.subr.mxu0 0.0
    %826 = vmatpush2.msra.mxu0 0.0
    %827 = vmatprep.subr.mxu0 0.0
    %828 = vmatpush2.msra.mxu0 0.0
    %829 = vmatprep.subr.mxu0 0.0
    %830 = vmatpush2.msra.mxu0 0.0
    %831 = vmatprep.subr.mxu0 0.0
    %832 = vmatpush2.msra.mxu0 0.0
    %833 = vmatprep.mubr.f32.mxu0 0.0
    %834 = vmatmul.mubr.f32.gmra.mxu0 %v767
    %v835 = vpop.f32.mrf.mxu0
    %v836 = vadd.f32 0.0, %v835
    %v837 = vpop.f32.mrf.mxu0
    %838 = vdwg.mxu0
    %v840 = vrot.slane %v836, 3
    %v841 = vrot.slane %v836, 4
    %v844 = vadd.f32 %v124, %v840
    %v845 = vadd.f32 %v129, %v841
    %v846 = vtanh.pop %v844
    %v847 = vtanh.pop %v845
    %v848 = vxor.u32 %v844, 2147483648
    %v849 = vxor.u32 %v845, 2147483648
    %v850 = vmul.f32 %v848, 1.442695
    %v851 = vpow.pop %v850
    %v852 = vmul.f32 %v849, 1.442695
    %v853 = vpow.pop %v852
    %v854 = vadd.f32 %v851, 1.0
    %v855 = vadd.f32 %v853, 1.0
    %v856 = vrcp.pop %v854
    %v857 = vmul.f32 1.0, %v856
    %v858 = vrcp.pop %v855
    %v859 = vmul.f32 1.0, %v858
    %v862 = vrot.slane %v846, 5
    %v863 = vrot.slane %v847, 4
    %v864 = vsel %vm237, %v863, %v862
    %v868 = vrot.slane %v857, 5
    %v869 = vrot.slane %v859, 4
    %v870 = vsel %vm237, %v869, %v868
    %v872 = vsel %vm140, %v864, %v870
    %v873 = vmul.f32 %v872, %v757
    %875 = vrot.lane.b32.xlu0 %v872, 64
    %v876 = vpop.permute.xlu0 %875
    %v878 = vmul.f32 %v872, %v876
    %880 = vrot.lane.b32.xlu0 %v878, 32
    %v881 = vpop.permute.xlu0 %880
    %v883 = vadd.f32 %v873, %v881
    %v884 = vtanh.pop %v883
    %886 = vrot.lane.b32.xlu0 %v884, 64
    %v887 = vpop.permute.xlu0 %886
    %v889 = vmul.f32 %v872, %v887
    %891 = vrot.lane.b32.xlu0 %v889, 32
    %v892 = vpop.permute.xlu0 %891
    %v893 = vsel %vm50, %v892, 0
    %895 = vmatprep.subr.mxu0 0.0
    %896 = vmatpush1.msra.mxu0 0.0
    %897 = vmatprep.subr.mxu0 0.0
    %898 = vmatpush1.msra.mxu0 0.0
    %899 = vmatprep.subr.mxu0 0.0
    %900 = vmatpush1.msra.mxu0 0.0
    %901 = vmatprep.subr.mxu0 0.0
    %902 = vmatpush1.msra.mxu0 0.0
    %903 = vmatprep.subr.mxu0 0.0
    %904 = vmatpush1.msra.mxu0 0.0
    %905 = vmatprep.subr.mxu0 0.0
    %906 = vmatpush1.msra.mxu0 0.0
    %907 = vmatprep.subr.mxu0 0.0
    %908 = vmatpush1.msra.mxu0 0.0
    %909 = vmatprep.subr.mxu0 0.0
    %910 = vmatpush1.msra.mxu0 0.0
    %911 = vmatprep.subr.mxu0 0.0
    %912 = vmatpush1.msra.mxu0 0.0
    %913 = vmatprep.subr.mxu0 0.0
    %914 = vmatpush1.msra.mxu0 0.0
    %915 = vmatprep.subr.mxu0 0.0
    %916 = vmatpush1.msra.mxu0 0.0
    %917 = vmatprep.subr.mxu0 0.0
    %918 = vmatpush1.msra.mxu0 0.0
    %919 = vmatprep.subr.mxu0 0.0
    %920 = vmatpush1.msra.mxu0 %v135
    %921 = vmatprep.subr.mxu0 0.0
    %922 = vmatpush1.msra.mxu0 %v134
    %923 = vmatprep.subr.mxu0 0.0
    %924 = vmatpush1.msra.mxu0 %v133
    %925 = vmatprep.subr.mxu0 0.0
    %926 = vmatpush1.msra.mxu0 %v132
    %927 = vmatprep.subr.mxu0 0.0
    %928 = vmatpush2.msra.mxu0 0.0
    %929 = vmatprep.subr.mxu0 0.0
    %930 = vmatpush2.msra.mxu0 0.0
    %931 = vmatprep.subr.mxu0 0.0
    %932 = vmatpush2.msra.mxu0 0.0
    %933 = vmatprep.subr.mxu0 0.0
    %934 = vmatpush2.msra.mxu0 0.0
    %935 = vmatprep.subr.mxu0 0.0
    %936 = vmatpush2.msra.mxu0 0.0
    %937 = vmatprep.subr.mxu0 0.0
    %938 = vmatpush2.msra.mxu0 0.0
    %939 = vmatprep.subr.mxu0 0.0
    %940 = vmatpush2.msra.mxu0 0.0
    %941 = vmatprep.subr.mxu0 0.0
    %942 = vmatpush2.msra.mxu0 0.0
    %943 = vmatprep.subr.mxu0 0.0
    %944 = vmatpush2.msra.mxu0 0.0
    %945 = vmatprep.subr.mxu0 0.0
    %946 = vmatpush2.msra.mxu0 0.0
    %947 = vmatprep.subr.mxu0 0.0
    %948 = vmatpush2.msra.mxu0 0.0
    %949 = vmatprep.subr.mxu0 0.0
    %950 = vmatpush2.msra.mxu0 0.0
    %951 = vmatprep.subr.mxu0 0.0
    %952 = vmatpush2.msra.mxu0 0.0
    %953 = vmatprep.subr.mxu0 0.0
    %954 = vmatpush2.msra.mxu0 0.0
    %955 = vmatprep.subr.mxu0 0.0
    %956 = vmatpush2.msra.mxu0 0.0
    %957 = vmatprep.subr.mxu0 0.0
    %958 = vmatpush2.msra.mxu0 0.0
    %959 = vmatprep.mubr.f32.mxu0 0.0
    %960 = vmatmul.mubr.f32.gmra.mxu0 %v893
    %v961 = vpop.f32.mrf.mxu0
    %v962 = vadd.f32 0.0, %v961
    %v963 = vpop.f32.mrf.mxu0
    %964 = vdwg.mxu0
    %v966 = vrot.slane %v962, 2
    %v967 = vrot.slane %v962, 3
    %v970 = vadd.f32 %v124, %v966
    %v971 = vadd.f32 %v129, %v967
    %v972 = vtanh.pop %v970
    %v973 = vtanh.pop %v971
    %v974 = vxor.u32 %v970, 2147483648
    %v975 = vxor.u32 %v971, 2147483648
    %v976 = vmul.f32 %v974, 1.442695
    %v977 = vpow.pop %v976
    %v978 = vmul.f32 %v975, 1.442695
    %v979 = vpow.pop %v978
    %v980 = vadd.f32 %v977, 1.0
    %v981 = vadd.f32 %v979, 1.0
    %v982 = vrcp.pop %v980
    %v983 = vmul.f32 1.0, %v982
    %v984 = vrcp.pop %v981
    %v985 = vmul.f32 1.0, %v984
    %v988 = vrot.slane %v972, 6
    %v989 = vrot.slane %v973, 5
    %v990 = vsel %vm237, %v989, %v988
    %v994 = vrot.slane %v983, 6
    %v995 = vrot.slane %v985, 5
    %v996 = vsel %vm237, %v995, %v994
    %v998 = vsel %vm140, %v990, %v996
    %v999 = vmul.f32 %v998, %v883
    %1001 = vrot.lane.b32.xlu0 %v998, 64
    %v1002 = vpop.permute.xlu0 %1001
    %v1004 = vmul.f32 %v998, %v1002
    %1006 = vrot.lane.b32.xlu0 %v1004, 32
    %v1007 = vpop.permute.xlu0 %1006
    %v1009 = vadd.f32 %v999, %v1007
    %v1010 = vtanh.pop %v1009
    %1012 = vrot.lane.b32.xlu0 %v1010, 64
    %v1013 = vpop.permute.xlu0 %1012
    %v1015 = vmul.f32 %v998, %v1013
    %1017 = vrot.lane.b32.xlu0 %v1015, 32
    %v1018 = vpop.permute.xlu0 %1017
    %v1019 = vsel %vm50, %v1018, 0
    %1021 = vmatprep.subr.mxu0 0.0
    %1022 = vmatpush1.msra.mxu0 0.0
    %1023 = vmatprep.subr.mxu0 0.0
    %1024 = vmatpush1.msra.mxu0 0.0
    %1025 = vmatprep.subr.mxu0 0.0
    %1026 = vmatpush1.msra.mxu0 0.0
    %1027 = vmatprep.subr.mxu0 0.0
    %1028 = vmatpush1.msra.mxu0 0.0
    %1029 = vmatprep.subr.mxu0 0.0
    %1030 = vmatpush1.msra.mxu0 0.0
    %1031 = vmatprep.subr.mxu0 0.0
    %1032 = vmatpush1.msra.mxu0 0.0
    %1033 = vmatprep.subr.mxu0 0.0
    %1034 = vmatpush1.msra.mxu0 0.0
    %1035 = vmatprep.subr.mxu0 0.0
    %1036 = vmatpush1.msra.mxu0 0.0
    %1037 = vmatprep.subr.mxu0 0.0
    %1038 = vmatpush1.msra.mxu0 0.0
    %1039 = vmatprep.subr.mxu0 0.0
    %1040 = vmatpush1.msra.mxu0 0.0
    %1041 = vmatprep.subr.mxu0 0.0
    %1042 = vmatpush1.msra.mxu0 0.0
    %1043 = vmatprep.subr.mxu0 0.0
    %1044 = vmatpush1.msra.mxu0 0.0
    %1045 = vmatprep.subr.mxu0 0.0
    %1046 = vmatpush1.msra.mxu0 %v135
    %1047 = vmatprep.subr.mxu0 0.0
    %1048 = vmatpush1.msra.mxu0 %v134
    %1049 = vmatprep.subr.mxu0 0.0
    %1050 = vmatpush1.msra.mxu0 %v133
    %1051 = vmatprep.subr.mxu0 0.0
    %1052 = vmatpush1.msra.mxu0 %v132
    %1053 = vmatprep.subr.mxu0 0.0
    %1054 = vmatpush2.msra.mxu0 0.0
    %1055 = vmatprep.subr.mxu0 0.0
    %1056 = vmatpush2.msra.mxu0 0.0
    %1057 = vmatprep.subr.mxu0 0.0
    %1058 = vmatpush2.msra.mxu0 0.0
    %1059 = vmatprep.subr.mxu0 0.0
    %1060 = vmatpush2.msra.mxu0 0.0
    %1061 = vmatprep.subr.mxu0 0.0
    %1062 = vmatpush2.msra.mxu0 0.0
    %1063 = vmatprep.subr.mxu0 0.0
    %1064 = vmatpush2.msra.mxu0 0.0
    %1065 = vmatprep.subr.mxu0 0.0
    %1066 = vmatpush2.msra.mxu0 0.0
    %1067 = vmatprep.subr.mxu0 0.0
    %1068 = vmatpush2.msra.mxu0 0.0
    %1069 = vmatprep.subr.mxu0 0.0
    %1070 = vmatpush2.msra.mxu0 0.0
    %1071 = vmatprep.subr.mxu0 0.0
    %1072 = vmatpush2.msra.mxu0 0.0
    %1073 = vmatprep.subr.mxu0 0.0
    %1074 = vmatpush2.msra.mxu0 0.0
    %1075 = vmatprep.subr.mxu0 0.0
    %1076 = vmatpush2.msra.mxu0 0.0
    %1077 = vmatprep.subr.mxu0 0.0
    %1078 = vmatpush2.msra.mxu0 0.0
    %1079 = vmatprep.subr.mxu0 0.0
    %1080 = vmatpush2.msra.mxu0 0.0
    %1081 = vmatprep.subr.mxu0 0.0
    %1082 = vmatpush2.msra.mxu0 0.0
    %1083 = vmatprep.subr.mxu0 0.0
    %1084 = vmatpush2.msra.mxu0 0.0
    %1085 = vmatprep.mubr.f32.mxu0 0.0
    %1086 = vmatmul.mubr.f32.gmra.mxu0 %v1019
    %v1087 = vpop.f32.mrf.mxu0
    %v1088 = vadd.f32 0.0, %v1087
    %v1089 = vpop.f32.mrf.mxu0
    %1090 = vdwg.mxu0
    %v1092 = vrot.slane %v1088, 1
    %v1093 = vrot.slane %v1088, 2
    %v1096 = vadd.f32 %v124, %v1092
    %v1097 = vadd.f32 %v129, %v1093
    %v1098 = vtanh.pop %v1096
    %v1099 = vtanh.pop %v1097
    %v1100 = vxor.u32 %v1096, 2147483648
    %v1101 = vxor.u32 %v1097, 2147483648
    %v1102 = vmul.f32 %v1100, 1.442695
    %v1103 = vpow.pop %v1102
    %v1104 = vmul.f32 %v1101, 1.442695
    %v1105 = vpow.pop %v1104
    %v1106 = vadd.f32 %v1103, 1.0
    %v1107 = vadd.f32 %v1105, 1.0
    %v1108 = vrcp.pop %v1106
    %v1109 = vmul.f32 1.0, %v1108
    %v1110 = vrcp.pop %v1107
    %v1111 = vmul.f32 1.0, %v1110
    %v1114 = vrot.slane %v1098, 7
    %v1115 = vrot.slane %v1099, 6
    %v1116 = vsel %vm237, %v1115, %v1114
    %v1120 = vrot.slane %v1109, 7
    %v1121 = vrot.slane %v1111, 6
    %v1122 = vsel %vm237, %v1121, %v1120
    %v1124 = vsel %vm140, %v1116, %v1122
    %v1125 = vmul.f32 %v1124, %v1009
    %1127 = vrot.lane.b32.xlu0 %v1124, 64
    %v1128 = vpop.permute.xlu0 %1127
    %v1130 = vmul.f32 %v1124, %v1128
    %1132 = vrot.lane.b32.xlu0 %v1130, 32
    %v1133 = vpop.permute.xlu0 %1132
    %v1135 = vadd.f32 %v1125, %v1133
    %v1136 = vtanh.pop %v1135
    %1138 = vrot.lane.b32.xlu0 %v1136, 64
    %v1139 = vpop.permute.xlu0 %1138
    %v1141 = vmul.f32 %v1124, %v1139
    %1143 = vrot.lane.b32.xlu0 %v1141, 32
    %v1144 = vpop.permute.xlu0 %1143
    %vm1146 = vcmask 254976
    %1147 = vst.msk [vmem:[#allocation4] sm:$0x3] %vm1146, %v1144
    %1149 = vrot.lane.b32.xlu0 %v1135, 96
    %v1150 = vpop.permute.xlu0 %1149
    %1152 = vst.msk [vmem:[#allocation6] sm:$0x3] %vm1146, %v1150
    %v1153 = vld [vmem:[%s7] sm:$0x3f]
    %v1154 = vld [vmem:[%s8] sm:$0xf]
    %v1155 = vlaneseq
    %v1156 = vshrl.u32 %v1155, 7
    %v1157 = vsub.s32 3, %v1156
    %v1158 = vrot.slane %v1154, %v1157
    %1160 = vrot.lane.b32.xlu0 %v1158, 32
    %v1161 = vpop.permute.xlu0 %1160
    %v1163 = vsel %vm50, %v1144, %v1161
    %v1164 = vld [vmem:[%s4] sm:$0xff]
    %v1165 = vld [vmem:[%s4 + $0x8] sm:$0xff]
    %v1166 = vld [vmem:[%s4 + $0x10] sm:$0xff]
    %v1167 = vld [vmem:[%s4 + $0x18] sm:$0xff]
    %v1168 = vlaneseq
    %v1169 = vshrl.u32 %v1168, 7
    %v1170 = vsub.s32 0, %v1169
    %v1171 = vrot.slane %v1153, %v1170
    %v1172 = vsel %vm50, %v1144, 0
    %1174 = vmatprep.subr.mxu0 0.0
    %1175 = vmatpush1.msra.mxu0 0.0
    %1176 = vmatprep.subr.mxu0 0.0
    %1177 = vmatpush1.msra.mxu0 0.0
    %1178 = vmatprep.subr.mxu0 0.0
    %1179 = vmatpush1.msra.mxu0 0.0
    %1180 = vmatprep.subr.mxu0 0.0
    %1181 = vmatpush1.msra.mxu0 0.0
    %1182 = vmatprep.subr.mxu0 0.0
    %1183 = vmatpush1.msra.mxu0 0.0
    %1184 = vmatprep.subr.mxu0 0.0
    %1185 = vmatpush1.msra.mxu0 0.0
    %1186 = vmatprep.subr.mxu0 0.0
    %1187 = vmatpush1.msra.mxu0 0.0
    %1188 = vmatprep.subr.mxu0 0.0
    %1189 = vmatpush1.msra.mxu0 0.0
    %1190 = vmatprep.subr.mxu0 0.0
    %1191 = vmatpush1.msra.mxu0 0.0
    %1192 = vmatprep.subr.mxu0 0.0
    %1193 = vmatpush1.msra.mxu0 0.0
    %1194 = vmatprep.subr.mxu0 0.0
    %1195 = vmatpush1.msra.mxu0 0.0
    %1196 = vmatprep.subr.mxu0 0.0
    %1197 = vmatpush1.msra.mxu0 0.0
    %1198 = vmatprep.subr.mxu0 0.0
    %1199 = vmatpush1.msra.mxu0 %v1167
    %1200 = vmatprep.subr.mxu0 0.0
    %1201 = vmatpush1.msra.mxu0 %v1166
    %1202 = vmatprep.subr.mxu0 0.0
    %1203 = vmatpush1.msra.mxu0 %v1165
    %1204 = vmatprep.subr.mxu0 0.0
    %1205 = vmatpush1.msra.mxu0 %v1164
    %1206 = vmatprep.subr.mxu0 0.0
    %1207 = vmatpush2.msra.mxu0 0.0
    %1208 = vmatprep.subr.mxu0 0.0
    %1209 = vmatpush2.msra.mxu0 0.0
    %1210 = vmatprep.subr.mxu0 0.0
    %1211 = vmatpush2.msra.mxu0 0.0
    %1212 = vmatprep.subr.mxu0 0.0
    %1213 = vmatpush2.msra.mxu0 0.0
    %1214 = vmatprep.subr.mxu0 0.0
    %1215 = vmatpush2.msra.mxu0 0.0
    %1216 = vmatprep.subr.mxu0 0.0
    %1217 = vmatpush2.msra.mxu0 0.0
    %1218 = vmatprep.subr.mxu0 0.0
    %1219 = vmatpush2.msra.mxu0 0.0
    %1220 = vmatprep.subr.mxu0 0.0
    %1221 = vmatpush2.msra.mxu0 0.0
    %1222 = vmatprep.subr.mxu0 0.0
    %1223 = vmatpush2.msra.mxu0 0.0
    %1224 = vmatprep.subr.mxu0 0.0
    %1225 = vmatpush2.msra.mxu0 0.0
    %1226 = vmatprep.subr.mxu0 0.0
    %1227 = vmatpush2.msra.mxu0 0.0
    %1228 = vmatprep.subr.mxu0 0.0
    %1229 = vmatpush2.msra.mxu0 0.0
    %1230 = vmatprep.subr.mxu0 0.0
    %1231 = vmatpush2.msra.mxu0 0.0
    %1232 = vmatprep.subr.mxu0 0.0
    %1233 = vmatpush2.msra.mxu0 0.0
    %1234 = vmatprep.subr.mxu0 0.0
    %1235 = vmatpush2.msra.mxu0 0.0
    %1236 = vmatprep.subr.mxu0 0.0
    %1237 = vmatpush2.msra.mxu0 0.0
    %1238 = vmatprep.mubr.f32.mxu0 0.0
    %1239 = vmatmul.mubr.f32.gmra.mxu0 %v1172
    %v1240 = vpop.f32.mrf.mxu0
    %v1241 = vadd.f32 %v1171, %v1240
    %v1242 = vpop.f32.mrf.mxu0
    %1243 = vdwg.mxu0
    %vm1244 = vcmask 517120
    %v1245 = vsel %vm1244, %v1241, 0.0
    %1246 = vadd.xlane.f32.xlu0 %v1245
    %v1247 = vpop.xlane.xlu0 %1246
    %v1248 = vrcp.pop 64.0
    %v1249 = vmul.f32 %v1247, %v1248
    %v1250 = vsub.f32 %v1241, %v1249
    %v1251 = vmul.f32 %v1250, %v1250
    %v1252 = vsel %vm1244, %v1251, 0.0
    %1253 = vadd.xlane.f32.xlu0 %v1252
    %v1254 = vpop.xlane.xlu0 %1253
    %v1255 = vmul.f32 %v1254, %v1248
    %v1256 = vadd.f32 %v1255, 1e-05
    %v1257 = vrsqrt.pop %v1256
    %v1258 = vmul.f32 %v1250, %v1257
    %v1259 = vlaneseq
    %v1260 = vshrl.u32 %v1259, 7
    %v1261 = vsub.s32 1, %v1260
    %v1262 = vrot.slane %v1153, %v1261
    %v1263 = vmul.f32 %v1258, %v1262
    %v1264 = vlaneseq
    %v1265 = vshrl.u32 %v1264, 7
    %v1266 = vsub.s32 2, %v1265
    %v1267 = vrot.slane %v1153, %v1266
    %v1268 = vadd.f32 %v1263, %v1267
    %v1269 = vmax.f32 %v1268, 0.0
    %v1270 = vld [vmem:[%s5] sm:$0xff]
    %v1271 = vld [vmem:[%s5 + $0x8] sm:$0xff]
    %v1272 = vld [vmem:[%s5 + $0x10] sm:$0xff]
    %v1273 = vld [vmem:[%s5 + $0x18] sm:$0xff]
    %v1274 = vld [vmem:[%s5 + $0x20] sm:$0xff]
    %v1275 = vld [vmem:[%s5 + $0x28] sm:$0xff]
    %v1276 = vld [vmem:[%s5 + $0x30] sm:$0xff]
    %v1277 = vld [vmem:[%s5 + $0x38] sm:$0xff]
    %v1278 = vlaneseq
    %v1279 = vshrl.u32 %v1278, 7
    %v1280 = vsub.s32 3, %v1279
    %v1281 = vrot.slane %v1153, %v1280
    %vm1282 = vcmask 523264
    %v1284 = vsel %vm1282, %v1269, 0
    %1286 = vmatprep.subr.mxu0 0.0
    %1287 = vmatpush1.msra.mxu0 0.0
    %1288 = vmatprep.subr.mxu0 0.0
    %1289 = vmatpush1.msra.mxu0 0.0
    %1290 = vmatprep.subr.mxu0 0.0
    %1291 = vmatpush1.msra.mxu0 0.0
    %1292 = vmatprep.subr.mxu0 0.0
    %1293 = vmatpush1.msra.mxu0 0.0
    %1294 = vmatprep.subr.mxu0 0.0
    %1295 = vmatpush1.msra.mxu0 0.0
    %1296 = vmatprep.subr.mxu0 0.0
    %1297 = vmatpush1.msra.mxu0 0.0
    %1298 = vmatprep.subr.mxu0 0.0
    %1299 = vmatpush1.msra.mxu0 0.0
    %1300 = vmatprep.subr.mxu0 0.0
    %1301 = vmatpush1.msra.mxu0 0.0
    %1302 = vmatprep.subr.mxu0 0.0
    %1303 = vmatpush1.msra.mxu0 %v1277
    %1304 = vmatprep.subr.mxu0 0.0
    %1305 = vmatpush1.msra.mxu0 %v1276
    %1306 = vmatprep.subr.mxu0 0.0
    %1307 = vmatpush1.msra.mxu0 %v1275
    %1308 = vmatprep.subr.mxu0 0.0
    %1309 = vmatpush1.msra.mxu0 %v1274
    %1310 = vmatprep.subr.mxu0 0.0
    %1311 = vmatpush1.msra.mxu0 %v1273
    %1312 = vmatprep.subr.mxu0 0.0
    %1313 = vmatpush1.msra.mxu0 %v1272
    %1314 = vmatprep.subr.mxu0 0.0
    %1315 = vmatpush1.msra.mxu0 %v1271
    %1316 = vmatprep.subr.mxu0 0.0
    %1317 = vmatpush1.msra.mxu0 %v1270
    %1318 = vmatprep.subr.mxu0 0.0
    %1319 = vmatpush2.msra.mxu0 0.0
    %1320 = vmatprep.subr.mxu0 0.0
    %1321 = vmatpush2.msra.mxu0 0.0
    %1322 = vmatprep.subr.mxu0 0.0
    %1323 = vmatpush2.msra.mxu0 0.0
    %1324 = vmatprep.subr.mxu0 0.0
    %1325 = vmatpush2.msra.mxu0 0.0
    %1326 = vmatprep.subr.mxu0 0.0
    %1327 = vmatpush2.msra.mxu0 0.0
    %1328 = vmatprep.subr.mxu0 0.0
    %1329 = vmatpush2.msra.mxu0 0.0
    %1330 = vmatprep.subr.mxu0 0.0
    %1331 = vmatpush2.msra.mxu0 0.0
    %1332 = vmatprep.subr.mxu0 0.0
    %1333 = vmatpush2.msra.mxu0 0.0
    %1334 = vmatprep.subr.mxu0 0.0
    %1335 = vmatpush2.msra.mxu0 0.0
    %1336 = vmatprep.subr.mxu0 0.0
    %1337 = vmatpush2.msra.mxu0 0.0
    %1338 = vmatprep.subr.mxu0 0.0
    %1339 = vmatpush2.msra.mxu0 0.0
    %1340 = vmatprep.subr.mxu0 0.0
    %1341 = vmatpush2.msra.mxu0 0.0
    %1342 = vmatprep.subr.mxu0 0.0
    %1343 = vmatpush2.msra.mxu0 0.0
    %1344 = vmatprep.subr.mxu0 0.0
    %1345 = vmatpush2.msra.mxu0 0.0
    %1346 = vmatprep.subr.mxu0 0.0
    %1347 = vmatpush2.msra.mxu0 0.0
    %1348 = vmatprep.subr.mxu0 0.0
    %1349 = vmatpush2.msra.mxu0 0.0
    %1350 = vmatprep.mubr.f32.mxu0 0.0
    %1351 = vmatmul.mubr.f32.gmra.mxu0 %v1284
    %v1352 = vpop.f32.mrf.mxu0
    %v1353 = vadd.f32 %v1281, %v1352
    %v1354 = vpop.f32.mrf.mxu0
    %1355 = vdwg.mxu0
    %v1356 = vsel %vm1244, %v1353, 0.0
    %1357 = vadd.xlane.f32.xlu0 %v1356
    %v1358 = vpop.xlane.xlu0 %1357
    %v1359 = vmul.f32 %v1358, %v1248
    %v1360 = vsub.f32 %v1353, %v1359
    %v1361 = vmul.f32 %v1360, %v1360
    %v1362 = vsel %vm1244, %v1361, 0.0
    %1363 = vadd.xlane.f32.xlu0 %v1362
    %v1364 = vpop.xlane.xlu0 %1363
    %v1365 = vmul.f32 %v1364, %v1248
    %v1366 = vadd.f32 %v1365, 1e-05
    %v1367 = vrsqrt.pop %v1366
    %v1368 = vmul.f32 %v1360, %v1367
    %v1369 = vlaneseq
    %v1370 = vshrl.u32 %v1369, 7
    %v1371 = vsub.s32 4, %v1370
    %v1372 = vrot.slane %v1153, %v1371
    %v1373 = vmul.f32 %v1368, %v1372
    %v1374 = vlaneseq
    %v1375 = vshrl.u32 %v1374, 7
    %v1376 = vsub.s32 5, %v1375
    %v1377 = vrot.slane %v1153, %v1376
    %v1378 = vadd.f32 %v1373, %v1377
    %v1379 = vxor.u32 %v1378, 2147483648
    %v1380 = vmul.f32 %v1379, 1.442695
    %v1381 = vpow.pop %v1380
    %v1382 = vadd.f32 %v1381, 1.0
    %v1383 = vrcp.pop %v1382
    %v1384 = vmul.f32 1.0, %v1383
    %v1385 = vmul.f32 %v1163, %v1384
    %v1386 = vld [vmem:[%s6] sm:$0xff]
    %v1387 = vld [vmem:[%s6 + $0x8] sm:$0xff]
    %v1388 = vld [vmem:[%s6 + $0x10] sm:$0xff]
    %v1389 = vld [vmem:[%s6 + $0x18] sm:$0xff]
    %v1390 = vld [vmem:[%s6 + $0x20] sm:$0xff]
    %v1391 = vld [vmem:[%s6 + $0x28] sm:$0xff]
    %v1392 = vld [vmem:[%s6 + $0x30] sm:$0xff]
    %v1393 = vld [vmem:[%s6 + $0x38] sm:$0xff]
    %v1394 = vlaneseq
    %v1395 = vshrl.u32 %v1394, 7
    %v1396 = vsub.s32 0, %v1395
    %v1397 = vrot.slane %v1154, %v1396
    %v1399 = vsel %vm1282, %v1385, 0
    %1401 = vmatprep.subr.mxu0 0.0
    %1402 = vmatpush1.msra.mxu0 0.0
    %1403 = vmatprep.subr.mxu0 0.0
    %1404 = vmatpush1.msra.mxu0 0.0
    %1405 = vmatprep.subr.mxu0 0.0
    %1406 = vmatpush1.msra.mxu0 0.0
    %1407 = vmatprep.subr.mxu0 0.0
    %1408 = vmatpush1.msra.mxu0 0.0
    %1409 = vmatprep.subr.mxu0 0.0
    %1410 = vmatpush1.msra.mxu0 0.0
    %1411 = vmatprep.subr.mxu0 0.0
    %1412 = vmatpush1.msra.mxu0 0.0
    %1413 = vmatprep.subr.mxu0 0.0
    %1414 = vmatpush1.msra.mxu0 0.0
    %1415 = vmatprep.subr.mxu0 0.0
    %1416 = vmatpush1.msra.mxu0 0.0
    %1417 = vmatprep.subr.mxu0 0.0
    %1418 = vmatpush1.msra.mxu0 %v1393
    %1419 = vmatprep.subr.mxu0 0.0
    %1420 = vmatpush1.msra.mxu0 %v1392
    %1421 = vmatprep.subr.mxu0 0.0
    %1422 = vmatpush1.msra.mxu0 %v1391
    %1423 = vmatprep.subr.mxu0 0.0
    %1424 = vmatpush1.msra.mxu0 %v1390
    %1425 = vmatprep.subr.mxu0 0.0
    %1426 = vmatpush1.msra.mxu0 %v1389
    %1427 = vmatprep.subr.mxu0 0.0
    %1428 = vmatpush1.msra.mxu0 %v1388
    %1429 = vmatprep.subr.mxu0 0.0
    %1430 = vmatpush1.msra.mxu0 %v1387
    %1431 = vmatprep.subr.mxu0 0.0
    %1432 = vmatpush1.msra.mxu0 %v1386
    %1433 = vmatprep.subr.mxu0 0.0
    %1434 = vmatpush2.msra.mxu0 0.0
    %1435 = vmatprep.subr.mxu0 0.0
    %1436 = vmatpush2.msra.mxu0 0.0
    %1437 = vmatprep.subr.mxu0 0.0
    %1438 = vmatpush2.msra.mxu0 0.0
    %1439 = vmatprep.subr.mxu0 0.0
    %1440 = vmatpush2.msra.mxu0 0.0
    %1441 = vmatprep.subr.mxu0 0.0
    %1442 = vmatpush2.msra.mxu0 0.0
    %1443 = vmatprep.subr.mxu0 0.0
    %1444 = vmatpush2.msra.mxu0 0.0
    %1445 = vmatprep.subr.mxu0 0.0
    %1446 = vmatpush2.msra.mxu0 0.0
    %1447 = vmatprep.subr.mxu0 0.0
    %1448 = vmatpush2.msra.mxu0 0.0
    %1449 = vmatprep.subr.mxu0 0.0
    %1450 = vmatpush2.msra.mxu0 0.0
    %1451 = vmatprep.subr.mxu0 0.0
    %1452 = vmatpush2.msra.mxu0 0.0
    %1453 = vmatprep.subr.mxu0 0.0
    %1454 = vmatpush2.msra.mxu0 0.0
    %1455 = vmatprep.subr.mxu0 0.0
    %1456 = vmatpush2.msra.mxu0 0.0
    %1457 = vmatprep.subr.mxu0 0.0
    %1458 = vmatpush2.msra.mxu0 0.0
    %1459 = vmatprep.subr.mxu0 0.0
    %1460 = vmatpush2.msra.mxu0 0.0
    %1461 = vmatprep.subr.mxu0 0.0
    %1462 = vmatpush2.msra.mxu0 0.0
    %1463 = vmatprep.subr.mxu0 0.0
    %1464 = vmatpush2.msra.mxu0 0.0
    %1465 = vmatprep.mubr.f32.mxu0 0.0
    %1466 = vmatmul.mubr.f32.gmra.mxu0 %v1399
    %v1467 = vpop.f32.mrf.mxu0
    %v1468 = vadd.f32 %v1397, %v1467
    %v1469 = vpop.f32.mrf.mxu0
    %1470 = vdwg.mxu0
    %v1471 = vsel %vm1146, %v1468, 0.0
    %1472 = vadd.xlane.f32.xlu0 %v1471
    %v1473 = vpop.xlane.xlu0 %1472
    %v1474 = vrcp.pop 32.0
    %v1475 = vmul.f32 %v1473, %v1474
    %v1476 = vsub.f32 %v1468, %v1475
    %v1477 = vmul.f32 %v1476, %v1476
    %v1478 = vsel %vm1146, %v1477, 0.0
    %1479 = vadd.xlane.f32.xlu0 %v1478
    %v1480 = vpop.xlane.xlu0 %1479
    %v1481 = vmul.f32 %v1480, %v1474
    %v1482 = vadd.f32 %v1481, 1e-05
    %v1483 = vrsqrt.pop %v1482
    %v1484 = vmul.f32 %v1476, %v1483
    %v1485 = vlaneseq
    %v1486 = vshrl.u32 %v1485, 7
    %v1487 = vsub.s32 1, %v1486
    %v1488 = vrot.slane %v1154, %v1487
    %v1489 = vmul.f32 %v1484, %v1488
    %v1490 = vlaneseq
    %v1491 = vshrl.u32 %v1490, 7
    %v1492 = vsub.s32 2, %v1491
    %v1493 = vrot.slane %v1154, %v1492
    %v1494 = vadd.f32 %v1489, %v1493
    %v1495 = vmax.f32 %v1494, 0.0
    %1496 = vst.msk [vmem:[#allocation2] sm:$0x3] %vm1146, %v1495
    // Predicated region
    $region38: #{dual_memory_forward.1} parent=1 // pred_check
      _
    $region39: #{dual_memory_forward.1} parent=1 // pred_check_branch
      %1498 = sbr.rel (0) target = $region41
    $region40: #{dual_memory_forward.1} parent=1 // pred_region
      %s1500 = ssub.s32 32, 32
      %1501 = vsyncadd [#allocation3], %s1500
      %s1503 = sshll.u32 [#allocation2], 4
      %s1504 = int_to_ptr.vmem [resolvable:$true] %s1503
      %1506 = dma.vmem_to_hbm [thread:$0]  %s1504, 32, %s9, [#allocation3]
    $region41: #{dual_memory_forward.1} parent=1 // pred_fallthru
      _
    // Predicated region
    $region42: #{dual_memory_forward.1} parent=1 // pred_check
      _
    $region43: #{dual_memory_forward.1} parent=1 // pred_check_branch
      %1508 = sbr.rel (0) target = $region45
    $region44: #{dual_memory_forward.1} parent=1 // pred_region
      %s1510 = ssub.s32 32, 32
      %1511 = vsyncadd [#allocation5], %s1510
      %s1513 = sshll.u32 [#allocation4], 4
      %s1514 = int_to_ptr.vmem [resolvable:$true] %s1513
      %1516 = dma.vmem_to_hbm [thread:$0]  %s1514, 32, %s10, [#allocation5]
    $region45: #{dual_memory_forward.1} parent=1 // pred_fallthru
      _
    // Predicated region
    $region46: #{dual_memory_forward.1} parent=1 // pred_check
      _
    $region47: #{dual_memory_forward.1} parent=1 // pred_check_branch
      %1518 = sbr.rel (0) target = $region49
    $region48: #{dual_memory_forward.1} parent=1 // pred_region
      %s1520 = ssub.s32 32, 32
      %1521 = vsyncadd [#allocation5], %s1520
      %s1523 = sshll.u32 [#allocation6], 4
      %s1524 = int_to_ptr.vmem [resolvable:$true] %s1523
      %1526 = dma.vmem_to_hbm [thread:$0]  %s1524, 32, %s11, [#allocation5]
    $region49: #{dual_memory_forward.1} parent=1 // pred_fallthru
      _
    // Predicated region
    $region50: #{dual_memory_forward.1} parent=1 // pred_check
      _
    $region51: #{dual_memory_forward.1} parent=1 // pred_check_branch
      %1528 = sbr.rel (0) target = $region53
    $region52: #{dual_memory_forward.1} parent=1 // pred_region
      %1529 = dma.done [#allocation3], 32
    $region53: #{dual_memory_forward.1} parent=1 // pred_fallthru
      _
    // Predicated region
    $region54: #{dual_memory_forward.1} parent=1 // pred_check
      _
    $region55: #{dual_memory_forward.1} parent=1 // pred_check_branch
      %1531 = sbr.rel (0) target = $region57
    $region56: #{dual_memory_forward.1} parent=1 // pred_region
      %1532 = dma.done [#allocation5], 32
    $region57: #{dual_memory_forward.1} parent=1 // pred_fallthru
      _
    // Predicated region
    $region58: #{dual_memory_forward.1} parent=1 // pred_check
      _
    $region59: #{dual_memory_forward.1} parent=1 // pred_check_branch
      %1534 = sbr.rel (0) target = $region61
    $region60: #{dual_memory_forward.1} parent=1 // pred_region
      %1535 = dma.done [#allocation5], 32
    $region61: #{dual_memory_forward.1} parent=1 // pred_fallthru
      _
    %1536 = vsyncpa [#allocation3], 1
    %1537 = vsyncpa [#allocation5], 1

</llo_original>
